<compile_context>
chip_gen: v7x
topology: tpu7x:2x2x1
jax: 0.10.0
libtpu: 0.0.40
codegen_flags: <defaults>
</compile_context>

<pallas_src>
import functools

import jax
import jax.numpy as jnp
from jax.experimental import pallas as pl
from jax.experimental.pallas import tpu as pltpu


def _round_up(x, m):
    return (x + m - 1) // m * m


def decoder_step_kernel(tok_ref,              # (B,) int32   SMEM (scalar prefetch)
                        h_ref,                # (TB, H) f32  VMEM block (prev hidden)
                        emb_hbm,              # (V, E) f32   HBM (pl.ANY) - row gather
                        wih_ref, whh_ref,     # (E, 3H), (H, 3H) bf16 VMEM
                        bih_ref, bhh_ref,     # (1, 3H) f32 VMEM
                        wout_ref, bout_ref,   # (H, V) bf16, (1, V) f32 VMEM
                        pred_ref, hid_ref,    # (TB, V) f32, (TB, H) f32 VMEM blocks
                        x_scr, sem):          # (TB, E) f32 scratch, DMA semaphore
    TB, H = h_ref.shape
    base = pl.program_id(0) * TB

    # ---- embedding gather: DMA exactly TB rows of the HBM table into VMEM ----
    @pl.loop(0, TB)
    def _start(i):
        tok = tok_ref[base + i]
        pltpu.make_async_copy(emb_hbm.at[pl.ds(tok, 1)],
                              x_scr.at[pl.ds(i, 1)],
                              sem.at[0]).start()

    @pl.loop(0, TB)
    def _wait(i):
        # All row copies are identical in size; TB waits of one row == all done.
        pltpu.make_async_copy(emb_hbm.at[pl.ds(0, 1)],
                              x_scr.at[pl.ds(0, 1)],
                              sem.at[0]).wait()

    # ---- F.relu(embedding(input)) : f32 elementwise, bf16 only for the MXU ----
    x = jnp.maximum(x_scr[...], 0.0)                         # (TB, E) f32
    h = h_ref[...]                                           # (TB, H) f32

    # ---- GRU cell, gate order (r, z, n) as in torch.nn.GRU ----
    gi = jnp.dot(x.astype(jnp.bfloat16), wih_ref[...],
                 preferred_element_type=jnp.float32) + bih_ref[...]
    gh = jnp.dot(h.astype(jnp.bfloat16), whh_ref[...],
                 preferred_element_type=jnp.float32) + bhh_ref[...]

    r = jax.nn.sigmoid(gi[:, :H] + gh[:, :H])
    z = jax.nn.sigmoid(gi[:, H:2 * H] + gh[:, H:2 * H])
    n = jnp.tanh(gi[:, 2 * H:] + r * gh[:, 2 * H:])
    h_new = (1.0 - z) * n + z * h                            # (TB, H) f32

    # ---- Linear + LogSoftmax(dim=1) ----
    logits = jnp.dot(h_new.astype(jnp.bfloat16), wout_ref[...],
                     preferred_element_type=jnp.float32) + bout_ref[...]
    m = jnp.max(logits, axis=1, keepdims=True)
    lse = m + jnp.log(jnp.sum(jnp.exp(logits - m), axis=1, keepdims=True))
    pred_ref[...] = (logits - lse).astype(pred_ref.dtype)
    hid_ref[...] = h_new.astype(hid_ref.dtype)


@functools.partial(jax.jit, static_argnames=("block_b",))
def decoder_step_pallas(tokens, h, emb, w_ih_t, w_hh_t, b_ih, b_hh,
                        w_out_t, b_out, *, block_b):
    B, H = h.shape
    E = emb.shape[1]
    V = w_out_t.shape[1]
    n_blocks = B // block_b

    rep = lambda b, tok: (0, 0)   # constant block index -> weights stay VMEM-resident

    grid_spec = pltpu.PrefetchScalarGridSpec(
        num_scalar_prefetch=1,                       # token ids -> SMEM
        grid=(n_blocks,),
        in_specs=[
            pl.BlockSpec((block_b, H), lambda b, tok: (b, 0)),   # previous hidden
            pl.BlockSpec(memory_space=pl.ANY),                   # embedding table (HBM)
            pl.BlockSpec((E, 3 * H), rep),                       # W_ih^T (bf16)
            pl.BlockSpec((H, 3 * H), rep),                       # W_hh^T (bf16)
            pl.BlockSpec((1, 3 * H), rep),                       # b_ih
            pl.BlockSpec((1, 3 * H), rep),                       # b_hh
            pl.BlockSpec((H, V), rep),                           # W_out^T (bf16)
            pl.BlockSpec((1, V), rep),                           # b_out
        ],
        out_specs=(
            pl.BlockSpec((block_b, V), lambda b, tok: (b, 0)),   # log-softmax pred
            pl.BlockSpec((block_b, H), lambda b, tok: (b, 0)),   # new hidden
        ),
        scratch_shapes=[
            pltpu.VMEM((block_b, E), jnp.float32),               # gathered embeddings
            pltpu.SemaphoreType.DMA((1,)),                       # gather DMA semaphore
        ],
    )

    return pl.pallas_call(
        decoder_step_kernel,
        grid_spec=grid_spec,
        out_shape=(
            jax.ShapeDtypeStruct((B, V), jnp.float32),
            jax.ShapeDtypeStruct((B, H), jnp.float32),
        ),
        # Input index 1 == h (index 0 is the scalar-prefetch token array);
        # alias it onto output 1 (new hidden) -> in-place hidden update.
        input_output_aliases={1: 1},
        compiler_params=pltpu.CompilerParams(
            dimension_semantics=("parallel",),       # batch blocks shard across TCs (v7x)
            vmem_limit_bytes=32 * 1024 * 1024,
        ),
    )(tokens, h, emb, w_ih_t, w_hh_t, b_ih, b_hh, w_out_t, b_out)


class DecoderPallas:
    """JAX/Pallas port of the PyTorch Decoder (Embedding+ReLU+GRU+Linear+LogSoftmax)."""

    def __init__(self, output_dim, hidden_dim, embbed_dim, num_layers, key):
        assert num_layers == 1, "forward path only exercises a single GRU layer"
        self.output_dim = output_dim
        self.hidden_dim = hidden_dim
        self.embbed_dim = embbed_dim
        self.num_layers = num_layers

        k_emb, k_wih, k_whh, k_bih, k_bhh, k_wo, k_bo = jax.random.split(key, 7)

        # nn.Embedding default init: N(0, 1).  Kept f32 in HBM: only B rows are
        # gathered per step, so bf16 would not reduce traffic but would lose
        # exactness of the lookup.
        self.embedding = jax.random.normal(
            k_emb, (output_dim, embbed_dim), dtype=jnp.float32)

        # nn.GRU default init: U(-1/sqrt(H), 1/sqrt(H)); gate order (r, z, n).
        bound = 1.0 / float(hidden_dim) ** 0.5
        w_ih = jax.random.uniform(
            k_wih, (3 * hidden_dim, embbed_dim), jnp.float32, -bound, bound)
        w_hh = jax.random.uniform(
            k_whh, (3 * hidden_dim, hidden_dim), jnp.float32, -bound, bound)
        b_ih = jax.random.uniform(
            k_bih, (3 * hidden_dim,), jnp.float32, -bound, bound)
        b_hh = jax.random.uniform(
            k_bhh, (3 * hidden_dim,), jnp.float32, -bound, bound)

        # nn.Linear(hidden_dim, output_dim): U(-1/sqrt(H), 1/sqrt(H)).
        w_out = jax.random.uniform(
            k_wo, (output_dim, hidden_dim), jnp.float32, -bound, bound)
        b_out = jax.random.uniform(
            k_bo, (output_dim,), jnp.float32, -bound, bound)

        # Pre-transpose / pre-cast ONCE (never per call).  Matmul weights in
        # bf16 (MXU-native); biases stay f32 (added post-matmul on the VPU).
        self.w_ih_t = jnp.asarray(w_ih.T, dtype=jnp.bfloat16)   # (E, 3H)
        self.w_hh_t = jnp.asarray(w_hh.T, dtype=jnp.bfloat16)   # (H, 3H)
        self.b_ih = b_ih.reshape(1, -1)                          # (1, 3H) f32
        self.b_hh = b_hh.reshape(1, -1)                          # (1, 3H) f32
        self.w_out_t = jnp.asarray(w_out.T, dtype=jnp.bfloat16)  # (H, V)
        self.b_out = b_out.reshape(1, -1)                         # (1, V) f32

    def __call__(self, tokens, hidden):
        # tokens: int token ids, any shape flattening to (B,)  [= input.view(1,-1)]
        # hidden: (num_layers=1, B, H)
        tok = tokens.reshape(-1).astype(jnp.int32)
        B = tok.shape[0]
        h = hidden.reshape(B, self.hidden_dim)

        # Batch block size: big enough to feed the MXU, small enough that at
        # B >= 128 there are >= 2 blocks to shard across v7x's 2 TensorCores.
        block_b = 64 if B >= 128 else _round_up(B, 8)
        B_pad = _round_up(B, block_b)
        if B_pad != B:
            tok = jnp.pad(tok, (0, B_pad - B))
            h = jnp.pad(h, ((0, B_pad - B), (0, 0)))

        pred, h_new = decoder_step_pallas(
            tok, h, self.embedding,
            self.w_ih_t, self.w_hh_t, self.b_ih, self.b_hh,
            self.w_out_t, self.b_out, block_b=block_b)

        pred = pred[:B]
        h_new = h_new[:B]
        return pred, h_new.reshape(self.num_layers, B, self.hidden_dim)


def _reference_forward(dec, tokens, hidden):
    """Pure-JAX reference of the same decoder step (mirrors kernel precision)."""
    tok = tokens.reshape(-1)
    B = tok.shape[0]
    H = dec.hidden_dim
    x = jnp.maximum(jnp.take(dec.embedding, tok, axis=0), 0.0)     # (B, E) f32
    h = hidden.reshape(B, H)
    gi = jnp.dot(x.astype(jnp.bfloat16), dec.w_ih_t,
                 preferred_element_type=jnp.float32) + dec.b_ih
    gh = jnp.dot(h.astype(jnp.bfloat16), dec.w_hh_t,
                 preferred_element_type=jnp.float32) + dec.b_hh
    r = jax.nn.sigmoid(gi[:, :H] + gh[:, :H])
    z = jax.nn.sigmoid(gi[:, H:2 * H] + gh[:, H:2 * H])
    n = jnp.tanh(gi[:, 2 * H:] + r * gh[:, 2 * H:])
    h_new = (1.0 - z) * n + z * h
    logits = jnp.dot(h_new.astype(jnp.bfloat16), dec.w_out_t,
                     preferred_element_type=jnp.float32) + dec.b_out
    m = jnp.max(logits, axis=1, keepdims=True)
    lse = m + jnp.log(jnp.sum(jnp.exp(logits - m), axis=1, keepdims=True))
    return logits - lse, h_new.reshape(dec.num_layers, B, H)


if __name__ == "__main__":
    key = jax.random.PRNGKey(0)
    k_params, k_tok, k_hid = jax.random.split(key, 3)

    # Lane-aligned shapes: H = E = 128, vocab = 256 (2 lane tiles).
    # batch = 128 decode streams per call (review: amortize weights over batch).
    output_dim = 256
    hidden_dim = 128
    embbed_dim = 128
    num_layers = 1
    batch = 128

    dec = DecoderPallas(output_dim, hidden_dim, embbed_dim, num_layers, k_params)

    tokens = jax.random.randint(k_tok, (batch,), 0, output_dim, dtype=jnp.int32)
    hidden0 = jax.random.normal(k_hid, (num_layers, batch, hidden_dim), jnp.float32)

    prediction, hidden_out = dec(tokens, hidden0)
    prediction = jax.block_until_ready(prediction)
    hidden_out = jax.block_until_ready(hidden_out)

    ref_pred, ref_hid = _reference_forward(dec, tokens, hidden0)
    assert prediction.shape == (batch, output_dim)
    assert hidden_out.shape == (num_layers, batch, hidden_dim)
    # 10x tighter than the old one-hot version: the gather is exact and both
    # paths use identical bf16-operand / f32-accumulate matmuls.
    assert jnp.allclose(prediction, ref_pred, atol=5e-3, rtol=5e-3), \
        "prediction mismatch vs reference"
    assert jnp.allclose(hidden_out, ref_hid, atol=5e-3, rtol=5e-3), \
        "hidden mismatch vs reference"
    # log-softmax rows must (approximately) normalize to 1
    assert jnp.allclose(jnp.exp(prediction).sum(axis=1), 1.0, atol=1e-3)

    print("KERNEL_OK")
</pallas_src>

<mosaic_0001>
module attributes {stable_mosaic.version = 11 : i64} {
  func.func @decoder_step_kernel(%arg0: i32, %arg1: memref<128xi32, #tpu.memory_space<smem>>, %arg2: memref<64x128xf32, #tpu.memory_space<vmem>>, %arg3: memref<256x128xf32, #tpu.memory_space<any>>, %arg4: memref<128x384xbf16, #tpu.memory_space<vmem>>, %arg5: memref<128x384xbf16, #tpu.memory_space<vmem>>, %arg6: memref<1x384xf32, #tpu.memory_space<vmem>>, %arg7: memref<1x384xf32, #tpu.memory_space<vmem>>, %arg8: memref<128x256xbf16, #tpu.memory_space<vmem>>, %arg9: memref<1x256xf32, #tpu.memory_space<vmem>>, %arg10: memref<64x256xf32, #tpu.memory_space<vmem>>, %arg11: memref<64x128xf32, #tpu.memory_space<vmem>>, %arg12: memref<64x128xf32, #tpu.memory_space<vmem>>, %arg13: memref<1x!tpu.dma_semaphore, #tpu.memory_space<semaphore_mem>>) attributes {dimension_semantics = [#tpu.dimension_semantics<parallel>], iteration_bounds = array<i64: 2>, scalar_prefetch = 1 : i64, scratch_operands = 2 : i64, tpu.core_type = #tpu.core_type<tc>, window_params = [{transform_indices = @transform_0, window_bounds = array<i64: 64, 128>}, {}, {pipeline_mode = #tpu.pipeline_mode<synchronous>, transform_indices = @transform_2, window_bounds = array<i64: 128, 384>}, {pipeline_mode = #tpu.pipeline_mode<synchronous>, transform_indices = @transform_3, window_bounds = array<i64: 128, 384>}, {pipeline_mode = #tpu.pipeline_mode<synchronous>, transform_indices = @transform_4, window_bounds = array<i64: 1, 384>}, {pipeline_mode = #tpu.pipeline_mode<synchronous>, transform_indices = @transform_5, window_bounds = array<i64: 1, 384>}, {pipeline_mode = #tpu.pipeline_mode<synchronous>, transform_indices = @transform_6, window_bounds = array<i64: 128, 256>}, {pipeline_mode = #tpu.pipeline_mode<synchronous>, transform_indices = @transform_7, window_bounds = array<i64: 1, 256>}, {transform_indices = @transform_8, window_bounds = array<i64: 64, 256>}, {transform_indices = @transform_9, window_bounds = array<i64: 64, 128>}]} {
    %c64_i32 = arith.constant 64 : i32
    %0 = arith.muli %arg0, %c64_i32 : i32
    %c0_i32 = arith.constant 0 : i32
    %c64_i32_0 = arith.constant 64 : i32
    %1 = arith.addi %c0_i32, %c64_i32_0 : i32
    %c1_i32 = arith.constant 1 : i32
    scf.for %arg14 = %c0_i32 to %1 step %c1_i32  : i32 {
      %c1_i32_32 = arith.constant 1 : i32
      %64 = arith.muli %arg14, %c1_i32_32 : i32
      %c0_i32_33 = arith.constant 0 : i32
      %65 = arith.addi %c0_i32_33, %64 : i32
      %66 = arith.addi %0, %65 : i32
      %67 = arith.index_cast %66 : i32 to index
      %68 = memref.load %arg1[%67] : memref<128xi32, #tpu.memory_space<smem>>
      %c0_i32_34 = arith.constant 0 : i32
      %c0_i32_35 = arith.constant 0 : i32
      %69 = tpu.memref_slice %arg3[%68, %c0_i32_35] : memref<256x128xf32, #tpu.memory_space<any>> -> memref<1x128xf32, #tpu.memory_space<any>>
      %c0_i32_36 = arith.constant 0 : i32
      %70 = tpu.memref_slice %arg12[%65, %c0_i32_36] : memref<64x128xf32, #tpu.memory_space<vmem>> -> memref<1x128xf32, #tpu.memory_space<vmem>>
      %71 = tpu.memref_slice %arg13[%c0_i32_34] : memref<1x!tpu.dma_semaphore, #tpu.memory_space<semaphore_mem>> -> memref<1x!tpu.dma_semaphore, #tpu.memory_space<semaphore_mem>>
      %72 = tpu.memref_squeeze %71 : memref<1x!tpu.dma_semaphore, #tpu.memory_space<semaphore_mem>> -> memref<!tpu.dma_semaphore, #tpu.memory_space<semaphore_mem>>
      tpu.enqueue_dma source(%69 : memref<1x128xf32, #tpu.memory_space<any>>) target(%70 : memref<1x128xf32, #tpu.memory_space<vmem>>) target_semaphore(%72 : memref<!tpu.dma_semaphore, #tpu.memory_space<semaphore_mem>>)
    }
    %c64_i32_1 = arith.constant 64 : i32
    %c0_i32_2 = arith.constant 0 : i32
    %c64_i32_3 = arith.constant 64 : i32
    %2 = arith.addi %c0_i32_2, %c64_i32_3 : i32
    %c1_i32_4 = arith.constant 1 : i32
    scf.for %arg14 = %c0_i32_2 to %2 step %c1_i32_4  : i32 {
      %c0_i32_32 = arith.constant 0 : i32
      %c0_i32_33 = arith.constant 0 : i32
      %c0_i32_34 = arith.constant 0 : i32
      %64 = tpu.memref_slice %arg3[%c0_i32_33, %c0_i32_34] : memref<256x128xf32, #tpu.memory_space<any>> -> memref<1x128xf32, #tpu.memory_space<any>>
      %c0_i32_35 = arith.constant 0 : i32
      %c0_i32_36 = arith.constant 0 : i32
      %65 = tpu.memref_slice %arg12[%c0_i32_35, %c0_i32_36] : memref<64x128xf32, #tpu.memory_space<vmem>> -> memref<1x128xf32, #tpu.memory_space<vmem>>
      %66 = tpu.memref_slice %arg13[%c0_i32_32] : memref<1x!tpu.dma_semaphore, #tpu.memory_space<semaphore_mem>> -> memref<1x!tpu.dma_semaphore, #tpu.memory_space<semaphore_mem>>
      %67 = tpu.memref_squeeze %66 : memref<1x!tpu.dma_semaphore, #tpu.memory_space<semaphore_mem>> -> memref<!tpu.dma_semaphore, #tpu.memory_space<semaphore_mem>>
      tpu.wait_dma2 semaphore(%67 : memref<!tpu.dma_semaphore, #tpu.memory_space<semaphore_mem>>) src(%64 : memref<1x128xf32, #tpu.memory_space<any>>) dst(%65 : memref<1x128xf32, #tpu.memory_space<vmem>>)
    }
    %c0 = arith.constant 0 : index
    %c0_5 = arith.constant 0 : index
    %3 = vector.load %arg12[%c0, %c0_5] : memref<64x128xf32, #tpu.memory_space<vmem>>, vector<64x128xf32>
    %cst = arith.constant 0.000000e+00 : f32
    %4 = vector.broadcast %cst : f32 to vector<64x128xf32>
    %5 = arith.maximumf %3, %4 : vector<64x128xf32>
    %c0_6 = arith.constant 0 : index
    %c0_7 = arith.constant 0 : index
    %6 = vector.load %arg2[%c0_6, %c0_7] : memref<64x128xf32, #tpu.memory_space<vmem>>, vector<64x128xf32>
    %7 = arith.truncf %5 : vector<64x128xf32> to vector<64x128xbf16>
    %c0_8 = arith.constant 0 : index
    %c0_9 = arith.constant 0 : index
    %8 = vector.load %arg4[%c0_8, %c0_9] : memref<128x384xbf16, #tpu.memory_space<vmem>>, vector<128x384xbf16>
    %cst_10 = arith.constant dense<0.000000e+00> : vector<64x384xf32>
    %9 = tpu.matmul %7, %8, %cst_10 {dimension_numbers = #tpu.dot_dimension_numbers<[1], [0], [0], [1], [0, 0, 1, 1], [], []>} : vector<64x128xbf16>, vector<128x384xbf16>, vector<64x384xf32> -> vector<64x384xf32>
    %c0_11 = arith.constant 0 : index
    %c0_12 = arith.constant 0 : index
    %10 = vector.load %arg6[%c0_11, %c0_12] : memref<1x384xf32, #tpu.memory_space<vmem>>, vector<1x384xf32>
    %11 = vector.broadcast %10 : vector<1x384xf32> to vector<64x384xf32>
    %12 = arith.addf %9, %11 : vector<64x384xf32>
    %13 = arith.truncf %6 : vector<64x128xf32> to vector<64x128xbf16>
    %c0_13 = arith.constant 0 : index
    %c0_14 = arith.constant 0 : index
    %14 = vector.load %arg5[%c0_13, %c0_14] : memref<128x384xbf16, #tpu.memory_space<vmem>>, vector<128x384xbf16>
    %cst_15 = arith.constant dense<0.000000e+00> : vector<64x384xf32>
    %15 = tpu.matmul %13, %14, %cst_15 {dimension_numbers = #tpu.dot_dimension_numbers<[1], [0], [0], [1], [0, 0, 1, 1], [], []>} : vector<64x128xbf16>, vector<128x384xbf16>, vector<64x384xf32> -> vector<64x384xf32>
    %c0_16 = arith.constant 0 : index
    %c0_17 = arith.constant 0 : index
    %16 = vector.load %arg7[%c0_16, %c0_17] : memref<1x384xf32, #tpu.memory_space<vmem>>, vector<1x384xf32>
    %17 = vector.broadcast %16 : vector<1x384xf32> to vector<64x384xf32>
    %18 = arith.addf %15, %17 : vector<64x384xf32>
    %19 = vector.extract_strided_slice %12 {offsets = [0, 0], sizes = [64, 128], strides = [1, 1]} : vector<64x384xf32> to vector<64x128xf32>
    %20 = vector.extract_strided_slice %18 {offsets = [0, 0], sizes = [64, 128], strides = [1, 1]} : vector<64x384xf32> to vector<64x128xf32>
    %21 = arith.addf %19, %20 : vector<64x128xf32>
    %22 = arith.negf %21 : vector<64x128xf32>
    %23 = math.exp %22 : vector<64x128xf32>
    %cst_18 = arith.constant 1.000000e+00 : f32
    %24 = vector.broadcast %cst_18 : f32 to vector<64x128xf32>
    %25 = arith.addf %24, %23 : vector<64x128xf32>
    %26 = arith.divf %24, %25 : vector<64x128xf32>
    %27 = vector.extract_strided_slice %12 {offsets = [0, 128], sizes = [64, 128], strides = [1, 1]} : vector<64x384xf32> to vector<64x128xf32>
    %28 = vector.extract_strided_slice %18 {offsets = [0, 128], sizes = [64, 128], strides = [1, 1]} : vector<64x384xf32> to vector<64x128xf32>
    %29 = arith.addf %27, %28 : vector<64x128xf32>
    %30 = arith.negf %29 : vector<64x128xf32>
    %31 = math.exp %30 : vector<64x128xf32>
    %cst_19 = arith.constant 1.000000e+00 : f32
    %32 = vector.broadcast %cst_19 : f32 to vector<64x128xf32>
    %33 = arith.addf %32, %31 : vector<64x128xf32>
    %34 = arith.divf %32, %33 : vector<64x128xf32>
    %35 = vector.extract_strided_slice %12 {offsets = [0, 256], sizes = [64, 128], strides = [1, 1]} : vector<64x384xf32> to vector<64x128xf32>
    %36 = vector.extract_strided_slice %18 {offsets = [0, 256], sizes = [64, 128], strides = [1, 1]} : vector<64x384xf32> to vector<64x128xf32>
    %37 = arith.mulf %26, %36 : vector<64x128xf32>
    %38 = arith.addf %35, %37 : vector<64x128xf32>
    %39 = math.tanh %38 : vector<64x128xf32>
    %cst_20 = arith.constant 1.000000e+00 : f32
    %40 = vector.broadcast %cst_20 : f32 to vector<64x128xf32>
    %41 = arith.subf %40, %34 : vector<64x128xf32>
    %42 = arith.mulf %41, %39 : vector<64x128xf32>
    %43 = arith.mulf %34, %6 : vector<64x128xf32>
    %44 = arith.addf %42, %43 : vector<64x128xf32>
    %45 = arith.truncf %44 : vector<64x128xf32> to vector<64x128xbf16>
    %c0_21 = arith.constant 0 : index
    %c0_22 = arith.constant 0 : index
    %46 = vector.load %arg8[%c0_21, %c0_22] : memref<128x256xbf16, #tpu.memory_space<vmem>>, vector<128x256xbf16>
    %cst_23 = arith.constant dense<0.000000e+00> : vector<64x256xf32>
    %47 = tpu.matmul %45, %46, %cst_23 {dimension_numbers = #tpu.dot_dimension_numbers<[1], [0], [0], [1], [0, 0, 1, 1], [], []>} : vector<64x128xbf16>, vector<128x256xbf16>, vector<64x256xf32> -> vector<64x256xf32>
    %c0_24 = arith.constant 0 : index
    %c0_25 = arith.constant 0 : index
    %48 = vector.load %arg9[%c0_24, %c0_25] : memref<1x256xf32, #tpu.memory_space<vmem>>, vector<1x256xf32>
    %49 = vector.broadcast %48 : vector<1x256xf32> to vector<64x256xf32>
    %50 = arith.addf %47, %49 : vector<64x256xf32>
    %cst_26 = arith.constant dense<0xFF800000> : vector<64xf32>
    %51 = vector.multi_reduction <maximumf>, %50, %cst_26 [1] : vector<64x256xf32> to vector<64xf32>
    %52 = vector.shape_cast %51 : vector<64xf32> to vector<64x1xf32>
    %53 = vector.broadcast %52 : vector<64x1xf32> to vector<64x256xf32>
    %54 = arith.subf %50, %53 : vector<64x256xf32>
    %55 = math.exp %54 : vector<64x256xf32>
    %cst_27 = arith.constant dense<0.000000e+00> : vector<64xf32>
    %56 = vector.multi_reduction <add>, %55, %cst_27 [1] : vector<64x256xf32> to vector<64xf32>
    %57 = vector.shape_cast %56 : vector<64xf32> to vector<64x1xf32>
    %58 = math.log %57 : vector<64x1xf32>
    %59 = arith.addf %52, %58 : vector<64x1xf32>
    %60 = vector.broadcast %59 : vector<64x1xf32> to vector<64x256xf32>
    %61 = arith.subf %50, %60 : vector<64x256xf32>
    %c0_28 = arith.constant 0 : index
    %c0_29 = arith.constant 0 : index
    %62 = vector.load %arg10[%c0_28, %c0_29] : memref<64x256xf32, #tpu.memory_space<vmem>>, vector<64x256xf32>
    tpu.vector_store %arg10[%c0_28, %c0_29], %61 {strides = array<i32>} : memref<64x256xf32, #tpu.memory_space<vmem>>, vector<64x256xf32>,
    %c0_30 = arith.constant 0 : index
    %c0_31 = arith.constant 0 : index
    %63 = vector.load %arg11[%c0_30, %c0_31] : memref<64x128xf32, #tpu.memory_space<vmem>>, vector<64x128xf32>
    tpu.vector_store %arg11[%c0_30, %c0_31], %44 {strides = array<i32>} : memref<64x128xf32, #tpu.memory_space<vmem>>, vector<64x128xf32>,
    return
  }
  func.func @transform_0(%arg0: i32, %arg1: memref<128xi32, #tpu.memory_space<smem>>) -> (i32, i32) {
    %c0_i32 = arith.constant 0 : i32
    %c0_i32_0 = arith.constant 0 : i32
    return %arg0, %c0_i32 : i32, i32
  }
  func.func @transform_2(%arg0: i32, %arg1: memref<128xi32, #tpu.memory_space<smem>>) -> (i32, i32) {
    %c0_i32 = arith.constant 0 : i32
    %c0_i32_0 = arith.constant 0 : i32
    %c0_i32_1 = arith.constant 0 : i32
    return %c0_i32, %c0_i32_0 : i32, i32
  }
  func.func @transform_3(%arg0: i32, %arg1: memref<128xi32, #tpu.memory_space<smem>>) -> (i32, i32) {
    %c0_i32 = arith.constant 0 : i32
    %c0_i32_0 = arith.constant 0 : i32
    %c0_i32_1 = arith.constant 0 : i32
    return %c0_i32, %c0_i32_0 : i32, i32
  }
  func.func @transform_4(%arg0: i32, %arg1: memref<128xi32, #tpu.memory_space<smem>>) -> (i32, i32) {
    %c0_i32 = arith.constant 0 : i32
    %c0_i32_0 = arith.constant 0 : i32
    %c0_i32_1 = arith.constant 0 : i32
    return %c0_i32, %c0_i32_0 : i32, i32
  }
  func.func @transform_5(%arg0: i32, %arg1: memref<128xi32, #tpu.memory_space<smem>>) -> (i32, i32) {
    %c0_i32 = arith.constant 0 : i32
    %c0_i32_0 = arith.constant 0 : i32
    %c0_i32_1 = arith.constant 0 : i32
    return %c0_i32, %c0_i32_0 : i32, i32
  }
  func.func @transform_6(%arg0: i32, %arg1: memref<128xi32, #tpu.memory_space<smem>>) -> (i32, i32) {
    %c0_i32 = arith.constant 0 : i32
    %c0_i32_0 = arith.constant 0 : i32
    %c0_i32_1 = arith.constant 0 : i32
    return %c0_i32, %c0_i32_0 : i32, i32
  }
  func.func @transform_7(%arg0: i32, %arg1: memref<128xi32, #tpu.memory_space<smem>>) -> (i32, i32) {
    %c0_i32 = arith.constant 0 : i32
    %c0_i32_0 = arith.constant 0 : i32
    %c0_i32_1 = arith.constant 0 : i32
    return %c0_i32, %c0_i32_0 : i32, i32
  }
  func.func @transform_8(%arg0: i32, %arg1: memref<128xi32, #tpu.memory_space<smem>>) -> (i32, i32) {
    %c0_i32 = arith.constant 0 : i32
    %c0_i32_0 = arith.constant 0 : i32
    return %arg0, %c0_i32 : i32, i32
  }
  func.func @transform_9(%arg0: i32, %arg1: memref<128xi32, #tpu.memory_space<smem>>) -> (i32, i32) {
    %c0_i32 = arith.constant 0 : i32
    %c0_i32_0 = arith.constant 0 : i32
    return %arg0, %c0_i32 : i32, i32
  }
}

</mosaic_0001>

<llo_original>
// kernel: decoder_step_pallas.1
$region0: #{decoder_step_pallas.1}
  #allocation0 [shape = 'u32[]', space=smem, size = 0x4, offset = 0x4, fixed_abs, tag = 'smem constant byte address 0x4 - core index']
  #allocation1 [shape = 'u32[144,128]{1,0:T(1,128)}', space=vmem, size = 0x12000, scoped, tag = 'internal scratch']
  #allocation2 [shape = 'f32[64,128]{1,0:T(8,128)}', space=vmem, size = 0x8000, scoped, tag = 'scratch operand']
  #allocation3 [shape = 's32[1]{0}', space=sflag, size = 0x4, scoped, tag = 'scratch operand']
  #allocation4 [shape = 's32[1]{0}', space=sflag, size = 0x4, scoped, tag = 'scoped memory for decoder_step_pallas.1']
  #allocation5 [shape = 'u8[512]{0}', space=smem, size = 0x200, scoped, tag = 'prefetched SMEM operand 0']
  #allocation17 [shape = 's32[]', space=sflag, size = 0x4, offset = 0, fixed_abs, tag = 'sflag constant byte address 0x0 - dummy sync flag']
  %s0 = inlined_call_operand.vmem [shape: s32[128], index: 0, kind: input, shape index: {}]
  %s1 = inlined_call_operand.hbm [shape: f32[128,128], index: 1, kind: input, shape index: {}, may-alias: {1,10}]
  %s2 = inlined_call_operand.vmem [shape: f32[256,128], index: 2, kind: input, shape index: {}]
  %s3 = inlined_call_operand.hbm [shape: bf16[128,384], index: 3, kind: input, shape index: {}]
  %s4 = inlined_call_operand.hbm [shape: bf16[128,384], index: 4, kind: input, shape index: {}]
  %s5 = inlined_call_operand.vmem [shape: f32[1,384], index: 5, kind: input, shape index: {}]
  %s6 = inlined_call_operand.vmem [shape: f32[1,384], index: 6, kind: input, shape index: {}]
  %s7 = inlined_call_operand.hbm [shape: bf16[128,256], index: 7, kind: input, shape index: {}]
  %s8 = inlined_call_operand.vmem [shape: f32[1,256], index: 8, kind: input, shape index: {}]
  %s9 = inlined_call_operand.hbm [shape: f32[128,256], index: 9, kind: output, shape index: {0}]
  %s10 = inlined_call_operand.hbm [shape: f32[128,128], index: 10, kind: output, shape index: {1}, may-alias: {1,10}]
  %11 = xla_tuple %s9, %s10
  %s12 = sld [smem:[#allocation0]]
  $region129: #{decoder_step_pallas.1} parent=0
    _
  %s14 = ssub.s32 1, %s12
  %s15 = scalar_select 0, %s14, %s12
  %s16 = sshll.u32 %s0, 4
  %s17 = int_to_ptr.vmem [resolvable:$true] %s16
  %19 = dma.vmem_to_smem %s17, 16, [#allocation5], [#allocation4]
  %20 = dma.done [#allocation4], 16
  %21 = sfence
  $region1: #{decoder_step_pallas.1} parent=0
    #allocation6 [shape = 'u8[65536]{0}', space=vmem, size = 0x10000, scoped, tag = 'input window, operand 1']
    #allocation7 [shape = 's32[2]{0}', space=sflag, size = 0x8, scoped, tag = 'scoped memory for decoder_step_pallas.1']
    #allocation8 [shape = 's32[2]{0}', space=sflag, size = 0x8, scoped, tag = 'scoped memory for decoder_step_pallas.1']
    #allocation9 [shape = 'u8[98304]{0}', space=vmem, size = 0x18000, scoped, tag = 'input window, operand 3, single buffered']
    #allocation10 [shape = 's32[1]{0}', space=sflag, size = 0x4, scoped, tag = 'scoped memory for decoder_step_pallas.1']
    #allocation11 [shape = 'u8[98304]{0}', space=vmem, size = 0x18000, scoped, tag = 'input window, operand 4, single buffered']
    #allocation12 [shape = 'u8[65536]{0}', space=vmem, size = 0x10000, scoped, tag = 'input window, operand 7, single buffered']
    #allocation13 [shape = 's32[1]{0}', space=sflag, size = 0x4, scoped, tag = 'scoped memory for decoder_step_pallas.1']
    #allocation14 [shape = 'u8[131072]{0}', space=vmem, size = 0x20000, scoped, tag = 'output window, operand 0']
    #allocation15 [shape = 'u8[65536]{0}', space=vmem, size = 0x10000, scoped, tag = 'output window, operand 1']
    #allocation16 [shape = 's32[2]{0}', space=sflag, size = 0x8, scoped, tag = 'scoped memory for decoder_step_pallas.1']
    %22 = vsyncpa [#allocation7], 0
    %s23 = scalar_lea.sflag [#allocation7], 1
    %24 = vsyncpa %s23, 0
    %25 = vsyncpa [#allocation10], 0
    %26 = vsyncpa [#allocation13], 0
    %27 = vsyncpa [#allocation8], 0
    %s28 = scalar_lea.sflag [#allocation8], 1
    %29 = vsyncpa %s28, 0
    %30 = vsyncpa [#allocation16], 0
    %s31 = scalar_lea.sflag [#allocation16], 1
    %32 = vsyncpa %s31, 0
    loop: start=0, step=1, limit=4
    $region2: #{decoder_step_pallas.1} parent=1 // loop_pre_header
      _
    $region3: #{decoder_step_pallas.1} parent=1 // loop_header
      %s34 = sphi 0, %s38
      %p35 = scmp.ge.s32.totalorder %s34, 4
      %s44 = sphi 0, %s46
      %s47 = sphi 0, %s44
      %s48 = sphi 0, %s47
      %s64 = sphi 0, %s48
      %s68 = sphi 0, %s68
      %s70 = sphi 0, %s68
      %s71 = sphi 0, %s70
      %s85 = sphi 0, %s71
      %s89 = sphi 0, %s89
      %s91 = sphi 0, %s89
      %s92 = sphi 0, %s91
      %s106 = sphi 0, %s92
      %s110 = sphi 0, %s110
      %s112 = sphi 0, %s110
      %s113 = sphi 0, %s112
      %s127 = sphi 0, %s113
      %s131 = sphi 0, %s131
      %s133 = sphi 0, %s131
      %s134 = sphi 0, %s133
      %s148 = sphi 0, %s134
      %s152 = sphi 0, %s152
      %s154 = sphi 0, %s152
      %s155 = sphi 0, %s154
      %s169 = sphi 0, %s155
      %s173 = sphi 0, %s173
      %s175 = sphi 0, %s173
      %s176 = sphi 0, %s175
      %s190 = sphi 0, %s176
      %s196 = sphi 0, %s198
      %s199 = sphi 0, %s196
      %s200 = sphi 0, %s199
      %s216 = sphi 0, %s200
      %s222 = sphi 0, %s224
      %s225 = sphi 0, %s222
      %s226 = sphi 0, %s225
      %s242 = sphi 0, %s226
    $region4: #{decoder_step_pallas.1} parent=1 // loop_header_branch
      %37 = sbr.rel (%p35) target = $region8
    $region5: #{decoder_step_pallas.1} parent=1 // loop_body
      %s39 = ssub.s32 %s34, 1
      %s40 = ssub.s32 %s34, 2
      %s41 = sadd.s32 %s34, 1
      %s42 = ssub.s32 %s34, %s41
      %p43 = scmp.eq.s32.totalorder %s42, 0
      %s45 = sadd.s32 %s44, 1
      %s46 = scalar_select %p43, %s44, %s45
      %p49 = pneg %p43
      %p50 = scmp.eq.s32.totalorder %s34, 1
      %p51 = por %p49, %p50
      %p52 = scmp.ne.s32.totalorder %s44, %s47
      %p53 = scmp.eq.s32.totalorder %s34, 0
      %p54 = por %p52, %p53
      %p55 = scmp.ne.s32.totalorder %s44, %s47
      %p56 = scmp.eq.s32.totalorder %s39, 1
      %p57 = por %p55, %p56
      %p58 = scmp.ne.s32.totalorder %s47, %s48
      %p59 = scmp.eq.s32.totalorder %s39, 0
      %p60 = por %p58, %p59
      %p61 = scmp.ne.s32.totalorder %s47, %s48
      %p62 = scmp.eq.s32.totalorder %s40, 1
      %p63 = por %p61, %p62
      %p65 = scmp.ne.s32.totalorder %s48, %s64
      %p66 = scmp.eq.s32.totalorder %s40, 0
      %p67 = por %p65, %p66
      %s69 = sadd.s32 %s68, 1
      %p72 = scmp.eq.s32.totalorder %s34, 1
      %p73 = scmp.ne.s32.totalorder %s68, %s70
      %p74 = scmp.eq.s32.totalorder %s34, 0
      %p75 = por %p73, %p74
      %p76 = scmp.ne.s32.totalorder %s68, %s70
      %p77 = scmp.eq.s32.totalorder %s39, 1
      %p78 = por %p76, %p77
      %p79 = scmp.ne.s32.totalorder %s70, %s71
      %p80 = scmp.eq.s32.totalorder %s39, 0
      %p81 = por %p79, %p80
      %p82 = scmp.ne.s32.totalorder %s70, %s71
      %p83 = scmp.eq.s32.totalorder %s40, 1
      %p84 = por %p82, %p83
      %p86 = scmp.ne.s32.totalorder %s71, %s85
      %p87 = scmp.eq.s32.totalorder %s40, 0
      %p88 = por %p86, %p87
      %s90 = sadd.s32 %s89, 1
      %p93 = scmp.eq.s32.totalorder %s34, 1
      %p94 = scmp.ne.s32.totalorder %s89, %s91
      %p95 = scmp.eq.s32.totalorder %s34, 0
      %p96 = por %p94, %p95
      %p97 = scmp.ne.s32.totalorder %s89, %s91
      %p98 = scmp.eq.s32.totalorder %s39, 1
      %p99 = por %p97, %p98
      %p100 = scmp.ne.s32.totalorder %s91, %s92
      %p101 = scmp.eq.s32.totalorder %s39, 0
      %p102 = por %p100, %p101
      %p103 = scmp.ne.s32.totalorder %s91, %s92
      %p104 = scmp.eq.s32.totalorder %s40, 1
      %p105 = por %p103, %p104
      %p107 = scmp.ne.s32.totalorder %s92, %s106
      %p108 = scmp.eq.s32.totalorder %s40, 0
      %p109 = por %p107, %p108
      %s111 = sadd.s32 %s110, 1
      %p114 = scmp.eq.s32.totalorder %s34, 1
      %p115 = scmp.ne.s32.totalorder %s110, %s112
      %p116 = scmp.eq.s32.totalorder %s34, 0
      %p117 = por %p115, %p116
      %p118 = scmp.ne.s32.totalorder %s110, %s112
      %p119 = scmp.eq.s32.totalorder %s39, 1
      %p120 = por %p118, %p119
      %p121 = scmp.ne.s32.totalorder %s112, %s113
      %p122 = scmp.eq.s32.totalorder %s39, 0
      %p123 = por %p121, %p122
      %p124 = scmp.ne.s32.totalorder %s112, %s113
      %p125 = scmp.eq.s32.totalorder %s40, 1
      %p126 = por %p124, %p125
      %p128 = scmp.ne.s32.totalorder %s113, %s127
      %p129 = scmp.eq.s32.totalorder %s40, 0
      %p130 = por %p128, %p129
      %s132 = sadd.s32 %s131, 1
      %p135 = scmp.eq.s32.totalorder %s34, 1
      %p136 = scmp.ne.s32.totalorder %s131, %s133
      %p137 = scmp.eq.s32.totalorder %s34, 0
      %p138 = por %p136, %p137
      %p139 = scmp.ne.s32.totalorder %s131, %s133
      %p140 = scmp.eq.s32.totalorder %s39, 1
      %p141 = por %p139, %p140
      %p142 = scmp.ne.s32.totalorder %s133, %s134
      %p143 = scmp.eq.s32.totalorder %s39, 0
      %p144 = por %p142, %p143
      %p145 = scmp.ne.s32.totalorder %s133, %s134
      %p146 = scmp.eq.s32.totalorder %s40, 1
      %p147 = por %p145, %p146
      %p149 = scmp.ne.s32.totalorder %s134, %s148
      %p150 = scmp.eq.s32.totalorder %s40, 0
      %p151 = por %p149, %p150
      %s153 = sadd.s32 %s152, 1
      %p156 = scmp.eq.s32.totalorder %s34, 1
      %p157 = scmp.ne.s32.totalorder %s152, %s154
      %p158 = scmp.eq.s32.totalorder %s34, 0
      %p159 = por %p157, %p158
      %p160 = scmp.ne.s32.totalorder %s152, %s154
      %p161 = scmp.eq.s32.totalorder %s39, 1
      %p162 = por %p160, %p161
      %p163 = scmp.ne.s32.totalorder %s154, %s155
      %p164 = scmp.eq.s32.totalorder %s39, 0
      %p165 = por %p163, %p164
      %p166 = scmp.ne.s32.totalorder %s154, %s155
      %p167 = scmp.eq.s32.totalorder %s40, 1
      %p168 = por %p166, %p167
      %p170 = scmp.ne.s32.totalorder %s155, %s169
      %p171 = scmp.eq.s32.totalorder %s40, 0
      %p172 = por %p170, %p171
      %s174 = sadd.s32 %s173, 1
      %p177 = scmp.eq.s32.totalorder %s34, 1
      %p178 = scmp.ne.s32.totalorder %s173, %s175
      %p179 = scmp.eq.s32.totalorder %s34, 0
      %p180 = por %p178, %p179
      %p181 = scmp.ne.s32.totalorder %s173, %s175
      %p182 = scmp.eq.s32.totalorder %s39, 1
      %p183 = por %p181, %p182
      %p184 = scmp.ne.s32.totalorder %s175, %s176
      %p185 = scmp.eq.s32.totalorder %s39, 0
      %p186 = por %p184, %p185
      %p187 = scmp.ne.s32.totalorder %s175, %s176
      %p188 = scmp.eq.s32.totalorder %s40, 1
      %p189 = por %p187, %p188
      %p191 = scmp.ne.s32.totalorder %s176, %s190
      %p192 = scmp.eq.s32.totalorder %s40, 0
      %p193 = por %p191, %p192
      %s194 = ssub.s32 %s34, %s41
      %p195 = scmp.eq.s32.totalorder %s194, 0
      %s197 = sadd.s32 %s196, 1
      %s198 = scalar_select %p195, %s196, %s197
      %p201 = pneg %p195
      %p202 = scmp.eq.s32.totalorder %s34, 1
      %p203 = por %p201, %p202
      %p204 = scmp.ne.s32.totalorder %s196, %s199
      %p205 = scmp.eq.s32.totalorder %s34, 0
      %p206 = por %p204, %p205
      %p207 = scmp.ne.s32.totalorder %s196, %s199
      %p208 = scmp.eq.s32.totalorder %s39, 1
      %p209 = por %p207, %p208
      %p210 = scmp.ne.s32.totalorder %s199, %s200
      %p211 = scmp.eq.s32.totalorder %s39, 0
      %p212 = por %p210, %p211
      %p213 = scmp.ne.s32.totalorder %s199, %s200
      %p214 = scmp.eq.s32.totalorder %s40, 1
      %p215 = por %p213, %p214
      %p217 = scmp.ne.s32.totalorder %s200, %s216
      %p218 = scmp.eq.s32.totalorder %s40, 0
      %p219 = por %p217, %p218
      %s220 = ssub.s32 %s34, %s41
      %p221 = scmp.eq.s32.totalorder %s220, 0
      %s223 = sadd.s32 %s222, 1
      %s224 = scalar_select %p221, %s222, %s223
      %p227 = pneg %p221
      %p228 = scmp.eq.s32.totalorder %s34, 1
      %p229 = por %p227, %p228
      %p230 = scmp.ne.s32.totalorder %s222, %s225
      %p231 = scmp.eq.s32.totalorder %s34, 0
      %p232 = por %p230, %p231
      %p233 = scmp.ne.s32.totalorder %s222, %s225
      %p234 = scmp.eq.s32.totalorder %s39, 1
      %p235 = por %p233, %p234
      %p236 = scmp.ne.s32.totalorder %s225, %s226
      %p237 = scmp.eq.s32.totalorder %s39, 0
      %p238 = por %p236, %p237
      %p239 = scmp.ne.s32.totalorder %s225, %s226
      %p240 = scmp.eq.s32.totalorder %s40, 1
      %p241 = por %p239, %p240
      %p243 = scmp.ne.s32.totalorder %s226, %s242
      %p244 = scmp.eq.s32.totalorder %s40, 0
      %p245 = por %p243, %p244
      %p246 = scmp.le.s32.totalorder 1, %s34
      %p247 = scmp.lt.s32.totalorder %s34, 3
      %p248 = pnand %p246, %p247
      %p249 = pneg %p248
      // Predicated region
      $region9: #{decoder_step_pallas.1} parent=5 // pred_check
        _
      $region10: #{decoder_step_pallas.1} parent=5 // pred_check_branch
        %251 = sbr.rel (%p248) target = $region12
      $region11: #{decoder_step_pallas.1} parent=5 // pred_region
        %s252 = ssub.s32 %s34, 1
        // Predicated region
        $region13: #{decoder_step_pallas.1} parent=11 // pred_check
          %p253 = pneg %p81
        $region14: #{decoder_step_pallas.1} parent=11 // pred_check_branch
          %255 = sbr.rel (%p253) target = $region16
        $region15: #{decoder_step_pallas.1} parent=11 // pred_region
          %s257 = ssub.s32 3072, 3072
          %258 = vsyncadd [#allocation10], %s257
          %s259 = sshll.u32 [#allocation9], 4
          %s260 = int_to_ptr.vmem [resolvable:$true] %s259
          %265 = dma.hbm_to_vmem [thread:$0]  %s3, 3072, %s260, [#allocation10], 192, 192, 12
        $region16: #{decoder_step_pallas.1} parent=11 // pred_fallthru
          _
        // Predicated region
        $region17: #{decoder_step_pallas.1} parent=11 // pred_check
          %p266 = pneg %p102
        $region18: #{decoder_step_pallas.1} parent=11 // pred_check_branch
          %268 = sbr.rel (%p266) target = $region20
        $region19: #{decoder_step_pallas.1} parent=11 // pred_region
          %s270 = ssub.s32 3072, 3072
          %271 = vsyncadd [#allocation10], %s270
          %s272 = sshll.u32 [#allocation11], 4
          %s273 = int_to_ptr.vmem [resolvable:$true] %s272
          %278 = dma.hbm_to_vmem [thread:$0]  %s4, 3072, %s273, [#allocation10], 192, 192, 12
        $region20: #{decoder_step_pallas.1} parent=11 // pred_fallthru
          _
        // Predicated region
        $region21: #{decoder_step_pallas.1} parent=11 // pred_check
          %p279 = pneg %p123
        $region22: #{decoder_step_pallas.1} parent=11 // pred_check_branch
          %281 = sbr.rel (%p279) target = $region24
        $region23: #{decoder_step_pallas.1} parent=11 // pred_region
          _
        $region24: #{decoder_step_pallas.1} parent=11 // pred_fallthru
          _
        // Predicated region
        $region25: #{decoder_step_pallas.1} parent=11 // pred_check
          %p282 = pneg %p144
        $region26: #{decoder_step_pallas.1} parent=11 // pred_check_branch
          %284 = sbr.rel (%p282) target = $region28
        $region27: #{decoder_step_pallas.1} parent=11 // pred_region
          _
        $region28: #{decoder_step_pallas.1} parent=11 // pred_fallthru
          _
        // Predicated region
        $region29: #{decoder_step_pallas.1} parent=11 // pred_check
          %p285 = pneg %p165
        $region30: #{decoder_step_pallas.1} parent=11 // pred_check_branch
          %287 = sbr.rel (%p285) target = $region32
        $region31: #{decoder_step_pallas.1} parent=11 // pred_region
          %s289 = ssub.s32 2048, 2048
          %290 = vsyncadd [#allocation13], %s289
          %s291 = sshll.u32 [#allocation12], 4
          %s292 = int_to_ptr.vmem [resolvable:$true] %s291
          %297 = dma.hbm_to_vmem [thread:$0]  %s7, 2048, %s292, [#allocation13], 128, 128, 8
        $region32: #{decoder_step_pallas.1} parent=11 // pred_fallthru
          _
        // Predicated region
        $region33: #{decoder_step_pallas.1} parent=11 // pred_check
          %p298 = pneg %p186
        $region34: #{decoder_step_pallas.1} parent=11 // pred_check_branch
          %300 = sbr.rel (%p298) target = $region36
        $region35: #{decoder_step_pallas.1} parent=11 // pred_region
          _
        $region36: #{decoder_step_pallas.1} parent=11 // pred_fallthru
          _
      $region12: #{decoder_step_pallas.1} parent=5 // pred_fallthru
        _
      %p301 = scmp.lt.s32.totalorder %s34, 2
      // Predicated region
      $region37: #{decoder_step_pallas.1} parent=5 // pred_check
        %p302 = pneg %p301
      $region38: #{decoder_step_pallas.1} parent=5 // pred_check_branch
        %304 = sbr.rel (%p302) target = $region40
      $region39: #{decoder_step_pallas.1} parent=5 // pred_region
        // Predicated region
        $region41: #{decoder_step_pallas.1} parent=39 // pred_check
          %p305 = pneg %p54
        $region42: #{decoder_step_pallas.1} parent=39 // pred_check_branch
          %307 = sbr.rel (%p305) target = $region44
        $region43: #{decoder_step_pallas.1} parent=39 // pred_region
          %s308 = sand.u32 %s44, 1
          %s309 = scalar_lea.sflag [#allocation7], %s308
          %s310 = sand.u32 %s44, 1
          %s311 = smul.addr %s310, 64
          %s312 = scalar_lea.vmem [#allocation6], %s311
          %s313 = smul.u32 8, %s34
          %s315 = ssub.s32 1024, 1024
          %316 = vsyncadd %s309, %s315
          %s317 = smul.addr %s313, 128
          %s318 = scalar_lea.hbm %s1, %s317
          %s319 = sshll.u32 %s312, 4
          %s320 = int_to_ptr.vmem [resolvable:$true] %s319
          %325 = dma.hbm_to_vmem [thread:$0]  %s318, 1024, %s320, %s309, 128, 128, 8
        $region44: #{decoder_step_pallas.1} parent=39 // pred_fallthru
          _
      $region40: #{decoder_step_pallas.1} parent=5 // pred_fallthru
        _
      %p326 = scmp.le.s32.totalorder 1, %s34
      %p327 = scmp.lt.s32.totalorder %s34, 3
      %p328 = pnand %p326, %p327
      %p329 = pneg %p328
      // Predicated region
      $region45: #{decoder_step_pallas.1} parent=5 // pred_check
        _
      $region46: #{decoder_step_pallas.1} parent=5 // pred_check_branch
        %331 = sbr.rel (%p328) target = $region48
      $region47: #{decoder_step_pallas.1} parent=5 // pred_region
        %s332 = ssub.s32 %s34, 1
        %s333 = sand.u32 %s47, 1
        %s334 = scalar_lea.sflag [#allocation7], %s333
        %s335 = sand.u32 %s47, 1
        %s336 = smul.addr %s335, 64
        %s337 = scalar_lea.vmem [#allocation6], %s336
        // Predicated region
        $region49: #{decoder_step_pallas.1} parent=47 // pred_check
          %p338 = pneg %p60
        $region50: #{decoder_step_pallas.1} parent=47 // pred_check_branch
          %340 = sbr.rel (%p338) target = $region52
        $region51: #{decoder_step_pallas.1} parent=47 // pred_region
          %341 = dma.done %s334, 1024
        $region52: #{decoder_step_pallas.1} parent=47 // pred_fallthru
          _
        // Predicated region
        $region53: #{decoder_step_pallas.1} parent=47 // pred_check
          %p342 = pneg %p81
        $region54: #{decoder_step_pallas.1} parent=47 // pred_check_branch
          %344 = sbr.rel (%p342) target = $region56
        $region55: #{decoder_step_pallas.1} parent=47 // pred_region
          %345 = dma.done [#allocation10], 3072
        $region56: #{decoder_step_pallas.1} parent=47 // pred_fallthru
          _
        // Predicated region
        $region57: #{decoder_step_pallas.1} parent=47 // pred_check
          %p346 = pneg %p102
        $region58: #{decoder_step_pallas.1} parent=47 // pred_check_branch
          %348 = sbr.rel (%p346) target = $region60
        $region59: #{decoder_step_pallas.1} parent=47 // pred_region
          %349 = dma.done [#allocation10], 3072
        $region60: #{decoder_step_pallas.1} parent=47 // pred_fallthru
          _
        // Predicated region
        $region61: #{decoder_step_pallas.1} parent=47 // pred_check
          %p350 = pneg %p165
        $region62: #{decoder_step_pallas.1} parent=47 // pred_check_branch
          %352 = sbr.rel (%p350) target = $region64
        $region63: #{decoder_step_pallas.1} parent=47 // pred_region
          %353 = dma.done [#allocation13], 2048
        $region64: #{decoder_step_pallas.1} parent=47 // pred_fallthru
          _
        %s354 = sand.u32 %s47, 1
        %s355 = scalar_lea.sflag [#allocation7], %s354
        %s356 = sand.u32 %s47, 1
        %s357 = smul.addr %s356, 64
        %s358 = scalar_lea.vmem [#allocation6], %s357
        %p359 = pneg %p60
        %p360 = pneg %p57
        %p361 = pneg %p81
        %p362 = pneg %p78
        %p363 = pneg %p102
        %p364 = pneg %p99
        %p365 = pneg %p123
        %p366 = pneg %p120
        %p367 = pneg %p144
        %p368 = pneg %p141
        %p369 = pneg %p165
        %p370 = pneg %p162
        %p371 = pneg %p186
        %p372 = pneg %p183
        %p373 = pneg %p212
        %p374 = pneg %p209
        %s375 = sand.u32 %s199, 1
        %s376 = scalar_lea.sflag [#allocation8], %s375
        %s377 = sand.u32 %s199, 1
        %s378 = smul.addr %s377, 128
        %s379 = scalar_lea.vmem [#allocation14], %s378
        %p380 = pneg %p238
        %p381 = pneg %p235
        %s382 = sand.u32 %s225, 1
        %s383 = scalar_lea.sflag [#allocation16], %s382
        %s384 = sand.u32 %s225, 1
        %s385 = smul.addr %s384, 64
        %s386 = scalar_lea.vmem [#allocation15], %s385
        %s387 = smul.u32 8, %s39
        %s388 = smul.u32 8, %s39
        %s389 = smul.u32 8, %s39
        %s391 = smul.u32 %s39, 64
        loop: start=0, step=1, limit=64
        $region65: #{decoder_step_pallas.1} parent=47 // loop_pre_header
          _
        $region66: #{decoder_step_pallas.1} parent=47 // loop_header
          %s393 = sphi 0, %s397
          %p394 = scmp.ge.s32.totalorder %s393, 64
        $region67: #{decoder_step_pallas.1} parent=47 // loop_header_branch
          %396 = sbr.rel (%p394) target = $region71
        $region68: #{decoder_step_pallas.1} parent=47 // loop_body
          %s398 = sadd.s32 %s391, %s393
          %s399 = sld [smem:[#allocation5 + %s398]]
          %s400 = scalar_lea.vmem %s2, %s399
          %s401 = scalar_lea.vmem [#allocation2], %s393
          %p403 = scmp.lt.u32.totalorder 1, 8
          %p404 = pneg %p403
          // Predicated region
          $region72: #{decoder_step_pallas.1} parent=68 // pred_check
            _
          $region73: #{decoder_step_pallas.1} parent=68 // pred_check_branch
            %406 = sbr.rel (%p403) target = $region75
          $region74: #{decoder_step_pallas.1} parent=68 // pred_region
            %s421 = sand.u32 1, 7
            %p422 = scmp.eq.s32.totalorder %s421, 0
            %p423 = pneg %p422
            // Predicated region
            $region87: #{decoder_step_pallas.1} parent=74 // pred_check
              _
            $region88: #{decoder_step_pallas.1} parent=74 // pred_check_branch
              %425 = sbr.rel (%p422) target = $region90
            $region89: #{decoder_step_pallas.1} parent=74 // pred_region
              %s426 = sand.u32 1, 7
              %s427 = ssub.s32 1, %s426
              %s428 = scalar_lea.vmem %s400, %s427
              %s429 = ssub.s32 1, %s426
              %s430 = scalar_lea.vmem %s401, %s429 [#allocation2]
              %s431 = sshllo.u32 0, %s426
              loop: start=0, step=1, limit=1
              $region91: #{decoder_step_pallas.1} parent=89 // loop_pre_header
                _
              $region92: #{decoder_step_pallas.1} parent=89 // loop_header
                %s433 = sphi 0, %s437
                %p434 = scmp.ge.s32.totalorder %s433, 1
                %s438 = sphi %s428, %s428
                %s439 = sphi %s430, %s430
              $region93: #{decoder_step_pallas.1} parent=89 // loop_header_branch
                %436 = sbr.rel (%p434) target = $region97
              $region94: #{decoder_step_pallas.1} parent=89 // loop_body
                %v440 = vld [vmem:[%s438] sm:%s431]
                %441 = vst [vmem:[%s439] sm:%s431] %v440
              $region95: #{decoder_step_pallas.1} parent=89 // loop_footer
                %s437 = sadd.s32 1, %s433
              $region96: #{decoder_step_pallas.1} parent=89 // loop_footer_branch
                %432 = sbr.rel target = $region92
              $region97: #{decoder_step_pallas.1} parent=89 // loop_exit
                _
            $region90: #{decoder_step_pallas.1} parent=74 // pred_fallthru
              _
          $region75: #{decoder_step_pallas.1} parent=68 // pred_fallthru
            _
          // Predicated region
          $region76: #{decoder_step_pallas.1} parent=68 // pred_check
            %p407 = pneg %p403
          $region77: #{decoder_step_pallas.1} parent=68 // pred_check_branch
            %409 = sbr.rel (%p407) target = $region79
          $region78: #{decoder_step_pallas.1} parent=68 // pred_region
            %s410 = sshllo.u32 0, 1
            loop: start=0, step=1, limit=1
            $region80: #{decoder_step_pallas.1} parent=78 // loop_pre_header
              _
            $region81: #{decoder_step_pallas.1} parent=78 // loop_header
              %s412 = sphi 0, %s416
              %p413 = scmp.ge.s32.totalorder %s412, 1
              %s417 = sphi %s400, %s400
              %s418 = sphi %s401, %s401
            $region82: #{decoder_step_pallas.1} parent=78 // loop_header_branch
              %415 = sbr.rel (%p413) target = $region86
            $region83: #{decoder_step_pallas.1} parent=78 // loop_body
              %v419 = vld [vmem:[%s417] sm:%s410]
              %420 = vst [vmem:[%s418] sm:%s410] %v419
            $region84: #{decoder_step_pallas.1} parent=78 // loop_footer
              %s416 = sadd.s32 1, %s412
            $region85: #{decoder_step_pallas.1} parent=78 // loop_footer_branch
              %411 = sbr.rel target = $region81
            $region86: #{decoder_step_pallas.1} parent=78 // loop_exit
              _
          $region79: #{decoder_step_pallas.1} parent=68 // pred_fallthru
            _
          // Predicated region
          $region98: #{decoder_step_pallas.1} parent=68 // pred_check
            _
          $region99: #{decoder_step_pallas.1} parent=68 // pred_check_branch
            %444 = sbr.rel (0) target = $region101
          $region100: #{decoder_step_pallas.1} parent=68 // pred_region
            %445 = vsyncadd [#allocation3], 16
          $region101: #{decoder_step_pallas.1} parent=68 // pred_fallthru
            _
        $region69: #{decoder_step_pallas.1} parent=47 // loop_footer
          %s397 = sadd.s32 1, %s393
        $region70: #{decoder_step_pallas.1} parent=47 // loop_footer_branch
          %392 = sbr.rel target = $region66
        $region71: #{decoder_step_pallas.1} parent=47 // loop_exit
          _
        loop: start=0, step=1, limit=64
        $region102: #{decoder_step_pallas.1} parent=47 // loop_pre_header
          _
        $region103: #{decoder_step_pallas.1} parent=47 // loop_header
          %s447 = sphi 0, %s451
          %p448 = scmp.ge.s32.totalorder %s447, 64
        $region104: #{decoder_step_pallas.1} parent=47 // loop_header_branch
          %450 = sbr.rel (%p448) target = $region108
        $region105: #{decoder_step_pallas.1} parent=47 // loop_body
          %s452 = smul.u32 1, 1
          %s453 = sshll.u32 %s452, 4
          %454 = dma.done [#allocation3], %s453
        $region106: #{decoder_step_pallas.1} parent=47 // loop_footer
          %s451 = sadd.s32 1, %s447
        $region107: #{decoder_step_pallas.1} parent=47 // loop_footer_branch
          %446 = sbr.rel target = $region103
        $region108: #{decoder_step_pallas.1} parent=47 // loop_exit
          _
        %v455 = vld [vmem:[#allocation2] sm:$0xff]
        %v456 = vld [vmem:[#allocation2 + $0x8] sm:$0xff]
        %v457 = vld [vmem:[#allocation2 + $0x10] sm:$0xff]
        %v458 = vld [vmem:[#allocation2 + $0x18] sm:$0xff]
        %v459 = vld [vmem:[#allocation2 + $0x20] sm:$0xff]
        %v460 = vld [vmem:[#allocation2 + $0x28] sm:$0xff]
        %v461 = vld [vmem:[#allocation2 + $0x30] sm:$0xff]
        %v462 = vld [vmem:[#allocation2 + $0x38] sm:$0xff]
        %v463 = vmax.f32 %v455, 0.0
        %v464 = vmax.f32 %v456, 0.0
        %v465 = vmax.f32 %v457, 0.0
        %v466 = vmax.f32 %v458, 0.0
        %v467 = vmax.f32 %v459, 0.0
        %v468 = vmax.f32 %v460, 0.0
        %v469 = vmax.f32 %v461, 0.0
        %v470 = vmax.f32 %v462, 0.0
        %v471 = vld [vmem:[%s337] sm:$0xff]
        %v472 = vld [vmem:[%s337 + $0x8] sm:$0xff]
        %v473 = vld [vmem:[%s337 + $0x10] sm:$0xff]
        %v474 = vld [vmem:[%s337 + $0x18] sm:$0xff]
        %v475 = vld [vmem:[%s337 + $0x20] sm:$0xff]
        %v476 = vld [vmem:[%s337 + $0x28] sm:$0xff]
        %v477 = vld [vmem:[%s337 + $0x30] sm:$0xff]
        %v478 = vld [vmem:[%s337 + $0x38] sm:$0xff]
        %v479 = vpack.c.bf16 %v464, %v463
        %v480 = vpack.c.bf16 %v466, %v465
        %v481 = vpack.c.bf16 %v468, %v467
        %v482 = vpack.c.bf16 %v470, %v469
        %v483 = vld [vmem:[#allocation9] sm:$0xff]
        %v484 = vld [vmem:[#allocation9 + $0x8] sm:$0xf]
        %v485 = vld [vmem:[#allocation9 + $0xc] sm:$0xff]
        %v486 = vld [vmem:[#allocation9 + $0x14] sm:$0xf]
        %v487 = vld [vmem:[#allocation9 + $0x18] sm:$0xff]
        %v488 = vld [vmem:[#allocation9 + $0x20] sm:$0xf]
        %v489 = vld [vmem:[#allocation9 + $0x24] sm:$0xff]
        %v490 = vld [vmem:[#allocation9 + $0x2c] sm:$0xf]
        %v491 = vld [vmem:[#allocation9 + $0x30] sm:$0xff]
        %v492 = vld [vmem:[#allocation9 + $0x38] sm:$0xf]
        %v493 = vld [vmem:[#allocation9 + $0x3c] sm:$0xff]
        %v494 = vld [vmem:[#allocation9 + $0x44] sm:$0xf]
        %v495 = vld [vmem:[#allocation9 + $0x48] sm:$0xff]
        %v496 = vld [vmem:[#allocation9 + $0x50] sm:$0xf]
        %v497 = vld [vmem:[#allocation9 + $0x54] sm:$0xff]
        %v498 = vld [vmem:[#allocation9 + $0x5c] sm:$0xf]
        %v499 = vld [vmem:[#allocation9 + $0x60] sm:$0xff]
        %v500 = vld [vmem:[#allocation9 + $0x68] sm:$0xf]
        %v501 = vld [vmem:[#allocation9 + $0x6c] sm:$0xff]
        %v502 = vld [vmem:[#allocation9 + $0x74] sm:$0xf]
        %v503 = vld [vmem:[#allocation9 + $0x78] sm:$0xff]
        %v504 = vld [vmem:[#allocation9 + $0x80] sm:$0xf]
        %v505 = vld [vmem:[#allocation9 + $0x84] sm:$0xff]
        %v506 = vld [vmem:[#allocation9 + $0x8c] sm:$0xf]
        %v507 = vld [vmem:[#allocation9 + $0x90] sm:$0xff]
        %v508 = vld [vmem:[#allocation9 + $0x98] sm:$0xf]
        %v509 = vld [vmem:[#allocation9 + $0x9c] sm:$0xff]
        %v510 = vld [vmem:[#allocation9 + $0xa4] sm:$0xf]
        %v511 = vld [vmem:[#allocation9 + $0xa8] sm:$0xff]
        %v512 = vld [vmem:[#allocation9 + $0xb0] sm:$0xf]
        %v513 = vld [vmem:[#allocation9 + $0xb4] sm:$0xff]
        %v514 = vld [vmem:[#allocation9 + $0xbc] sm:$0xf]
        %v515 = vld [vmem:[%s5] sm:$0x7]
        %v517 = vlaneseq
        %v518 = vshrl.u32 %v517, 7
        %v519 = vsub.s32 0, %v518
        %v520 = vrot.slane %v515, %v519
        %v521 = vlaneseq
        %v522 = vshrl.u32 %v521, 7
        %v523 = vsub.s32 1, %v522
        %v524 = vrot.slane %v515, %v523
        %v525 = vlaneseq
        %v526 = vshrl.u32 %v525, 7
        %v527 = vsub.s32 2, %v526
        %v528 = vrot.slane %v515, %v527
        %v564 = vunpack.c.l.b16 %v483
        %v565 = vunpack.c.h.b16 %v483
        %v566 = vunpack.c.l.b16 %v484
        %v567 = vunpack.c.l.b16 %v485
        %v568 = vunpack.c.h.b16 %v485
        %v569 = vunpack.c.l.b16 %v486
        %v570 = vunpack.c.l.b16 %v487
        %v571 = vunpack.c.h.b16 %v487
        %v572 = vunpack.c.l.b16 %v488
        %v573 = vunpack.c.l.b16 %v489
        %v574 = vunpack.c.h.b16 %v489
        %v575 = vunpack.c.l.b16 %v490
        %v576 = vunpack.c.l.b16 %v491
        %v577 = vunpack.c.h.b16 %v491
        %v578 = vunpack.c.l.b16 %v492
        %v579 = vunpack.c.l.b16 %v493
        %v580 = vunpack.c.h.b16 %v493
        %v581 = vunpack.c.l.b16 %v494
        %v582 = vunpack.c.l.b16 %v495
        %v583 = vunpack.c.h.b16 %v495
        %v584 = vunpack.c.l.b16 %v496
        %v585 = vunpack.c.l.b16 %v497
        %v586 = vunpack.c.h.b16 %v497
        %v587 = vunpack.c.l.b16 %v498
        %v588 = vunpack.c.l.b16 %v499
        %v589 = vunpack.c.h.b16 %v499
        %v590 = vunpack.c.l.b16 %v500
        %v591 = vunpack.c.l.b16 %v501
        %v592 = vunpack.c.h.b16 %v501
        %v593 = vunpack.c.l.b16 %v502
        %v594 = vunpack.c.l.b16 %v503
        %v595 = vunpack.c.h.b16 %v503
        %v596 = vunpack.c.l.b16 %v504
        %v597 = vunpack.c.l.b16 %v505
        %v598 = vunpack.c.h.b16 %v505
        %v599 = vunpack.c.l.b16 %v506
        %v600 = vunpack.c.l.b16 %v507
        %v601 = vunpack.c.h.b16 %v507
        %v602 = vunpack.c.l.b16 %v508
        %v603 = vunpack.c.l.b16 %v509
        %v604 = vunpack.c.h.b16 %v509
        %v605 = vunpack.c.l.b16 %v510
        %v606 = vunpack.c.l.b16 %v511
        %v607 = vunpack.c.h.b16 %v511
        %v608 = vunpack.c.l.b16 %v512
        %v609 = vunpack.c.l.b16 %v513
        %v610 = vunpack.c.h.b16 %v513
        %v611 = vunpack.c.l.b16 %v514
        %v612 = vpack.c.b16 %v567, %v564
        %v613 = vpack.c.b16 %v568, %v565
        %v614 = vpack.c.b16 %v569, %v566
        %v615 = vpack.c.b16 %v573, %v570
        %v616 = vpack.c.b16 %v574, %v571
        %v617 = vpack.c.b16 %v575, %v572
        %v618 = vpack.c.b16 %v579, %v576
        %v619 = vpack.c.b16 %v580, %v577
        %v620 = vpack.c.b16 %v581, %v578
        %v621 = vpack.c.b16 %v585, %v582
        %v622 = vpack.c.b16 %v586, %v583
        %v623 = vpack.c.b16 %v587, %v584
        %v624 = vpack.c.b16 %v591, %v588
        %v625 = vpack.c.b16 %v592, %v589
        %v626 = vpack.c.b16 %v593, %v590
        %v627 = vpack.c.b16 %v597, %v594
        %v628 = vpack.c.b16 %v598, %v595
        %v629 = vpack.c.b16 %v599, %v596
        %v630 = vpack.c.b16 %v603, %v600
        %v631 = vpack.c.b16 %v604, %v601
        %v632 = vpack.c.b16 %v605, %v602
        %v633 = vpack.c.b16 %v609, %v606
        %v634 = vpack.c.b16 %v610, %v607
        %v635 = vpack.c.b16 %v611, %v608
        %660 = vmatprep.subr.bf16.mxu0 %v613
        %661 = vmatpush1.bf16.msra.mxu0 %v612
        %662 = vmatprep.subr.bf16.mxu0 %v616
        %663 = vmatpush1.bf16.msra.mxu0 %v615
        %664 = vmatprep.subr.bf16.mxu0 %v619
        %665 = vmatpush1.bf16.msra.mxu0 %v618
        %666 = vmatprep.subr.bf16.mxu0 %v622
        %667 = vmatpush1.bf16.msra.mxu0 %v621
        %668 = vmatprep.subr.bf16.mxu0 %v625
        %669 = vmatpush1.bf16.msra.mxu0 %v624
        %670 = vmatprep.subr.bf16.mxu0 %v628
        %671 = vmatpush1.bf16.msra.mxu0 %v627
        %672 = vmatprep.subr.bf16.mxu0 %v631
        %673 = vmatpush1.bf16.msra.mxu0 %v630
        %674 = vmatprep.subr.bf16.mxu0 %v634
        %675 = vmatpush1.bf16.msra.mxu0 %v633
        %676 = vmatprep.subr.bf16.mxu0 0
        %677 = vmatpush1.bf16.msra.mxu0 0
        %678 = vmatprep.subr.bf16.mxu0 0
        %679 = vmatpush1.bf16.msra.mxu0 0
        %680 = vmatprep.subr.bf16.mxu0 0
        %681 = vmatpush1.bf16.msra.mxu0 0
        %682 = vmatprep.subr.bf16.mxu0 0
        %683 = vmatpush1.bf16.msra.mxu0 0
        %684 = vmatprep.subr.bf16.mxu0 0
        %685 = vmatpush1.bf16.msra.mxu0 0
        %686 = vmatprep.subr.bf16.mxu0 0
        %687 = vmatpush1.bf16.msra.mxu0 0
        %688 = vmatprep.subr.bf16.mxu0 0
        %689 = vmatpush1.bf16.msra.mxu0 0
        %690 = vmatprep.subr.bf16.mxu0 0
        %691 = vmatpush1.bf16.msra.mxu0 0
        %692 = vmatprep.mubr.bf16.mxu0 0
        %693 = vmatmul.mubr.bf16.gmra.mrb[0].mxu0 %v479
        %v694 = vpop.f32.mrb[0].mxu0
        %v695 = vadd.f32 %v520, %v694
        %v696 = vpop.f32.mrb[0].mxu0
        %v697 = vadd.f32 %v524, %v696
        %v698 = vpop.f32.mrb[0].mxu0
        %v699 = vadd.f32 %v520, %v698
        %v700 = vpop.f32.mrb[0].mxu0
        %v701 = vadd.f32 %v524, %v700
        %702 = vmatprep.mubr.bf16.mxu0 0
        %703 = vmatmul.mubr.bf16.gmra.mrb[0].mxu0 %v480
        %v704 = vpop.f32.mrb[0].mxu0
        %v705 = vadd.f32 %v520, %v704
        %v706 = vpop.f32.mrb[0].mxu0
        %v707 = vadd.f32 %v524, %v706
        %v708 = vpop.f32.mrb[0].mxu0
        %v709 = vadd.f32 %v520, %v708
        %v710 = vpop.f32.mrb[0].mxu0
        %v711 = vadd.f32 %v524, %v710
        %712 = vmatprep.mubr.bf16.mxu0 0
        %713 = vmatmul.mubr.bf16.gmra.mrb[0].mxu0 %v481
        %v714 = vpop.f32.mrb[0].mxu0
        %v715 = vadd.f32 %v520, %v714
        %v716 = vpop.f32.mrb[0].mxu0
        %v717 = vadd.f32 %v524, %v716
        %v718 = vpop.f32.mrb[0].mxu0
        %v719 = vadd.f32 %v520, %v718
        %v720 = vpop.f32.mrb[0].mxu0
        %v721 = vadd.f32 %v524, %v720
        %722 = vmatprep.mubr.bf16.mxu0 0
        %723 = vmatmul.mubr.bf16.gmra.mrb[0].mxu0 %v482
        %v724 = vpop.f32.mrb[0].mxu0
        %v725 = vadd.f32 %v520, %v724
        %v726 = vpop.f32.mrb[0].mxu0
        %v727 = vadd.f32 %v524, %v726
        %v728 = vpop.f32.mrb[0].mxu0
        %v729 = vadd.f32 %v520, %v728
        %v730 = vpop.f32.mrb[0].mxu0
        %v731 = vadd.f32 %v524, %v730
        %732 = vdwg.mxu0
        %733 = vmatprep.subr.bf16.mxu0 0
        %734 = vmatpush1.bf16.msra.mxu0 %v614
        %735 = vmatprep.subr.bf16.mxu0 0
        %736 = vmatpush1.bf16.msra.mxu0 %v617
        %737 = vmatprep.subr.bf16.mxu0 0
        %738 = vmatpush1.bf16.msra.mxu0 %v620
        %739 = vmatprep.subr.bf16.mxu0 0
        %740 = vmatpush1.bf16.msra.mxu0 %v623
        %741 = vmatprep.subr.bf16.mxu0 0
        %742 = vmatpush1.bf16.msra.mxu0 %v626
        %743 = vmatprep.subr.bf16.mxu0 0
        %744 = vmatpush1.bf16.msra.mxu0 %v629
        %745 = vmatprep.subr.bf16.mxu0 0
        %746 = vmatpush1.bf16.msra.mxu0 %v632
        %747 = vmatprep.subr.bf16.mxu0 0
        %748 = vmatpush1.bf16.msra.mxu0 %v635
        %749 = vmatprep.subr.bf16.mxu0 0
        %750 = vmatpush1.bf16.msra.mxu0 0
        %751 = vmatprep.subr.bf16.mxu0 0
        %752 = vmatpush1.bf16.msra.mxu0 0
        %753 = vmatprep.subr.bf16.mxu0 0
        %754 = vmatpush1.bf16.msra.mxu0 0
        %755 = vmatprep.subr.bf16.mxu0 0
        %756 = vmatpush1.bf16.msra.mxu0 0
        %757 = vmatprep.subr.bf16.mxu0 0
        %758 = vmatpush1.bf16.msra.mxu0 0
        %759 = vmatprep.subr.bf16.mxu0 0
        %760 = vmatpush1.bf16.msra.mxu0 0
        %761 = vmatprep.subr.bf16.mxu0 0
        %762 = vmatpush1.bf16.msra.mxu0 0
        %763 = vmatprep.subr.bf16.mxu0 0
        %764 = vmatpush1.bf16.msra.mxu0 0
        %765 = vmatprep.mubr.bf16.mxu0 0
        %766 = vmatmul.mubr.bf16.gmra.mrb[0].mxu0 %v479
        %v767 = vpop.f32.mrb[0].mxu0
        %v768 = vadd.f32 %v528, %v767
        %v769 = vpop.f32.mrb[0].mxu0
        %v770 = vpop.f32.mrb[0].mxu0
        %v771 = vadd.f32 %v528, %v770
        %v772 = vpop.f32.mrb[0].mxu0
        %773 = vmatprep.mubr.bf16.mxu0 0
        %774 = vmatmul.mubr.bf16.gmra.mrb[0].mxu0 %v480
        %v775 = vpop.f32.mrb[0].mxu0
        %v776 = vadd.f32 %v528, %v775
        %v777 = vpop.f32.mrb[0].mxu0
        %v778 = vpop.f32.mrb[0].mxu0
        %v779 = vadd.f32 %v528, %v778
        %v780 = vpop.f32.mrb[0].mxu0
        %781 = vmatprep.mubr.bf16.mxu0 0
        %782 = vmatmul.mubr.bf16.gmra.mrb[0].mxu0 %v481
        %v783 = vpop.f32.mrb[0].mxu0
        %v784 = vadd.f32 %v528, %v783
        %v785 = vpop.f32.mrb[0].mxu0
        %v786 = vpop.f32.mrb[0].mxu0
        %v787 = vadd.f32 %v528, %v786
        %v788 = vpop.f32.mrb[0].mxu0
        %789 = vmatprep.mubr.bf16.mxu0 0
        %790 = vmatmul.mubr.bf16.gmra.mrb[0].mxu0 %v482
        %v791 = vpop.f32.mrb[0].mxu0
        %v792 = vadd.f32 %v528, %v791
        %v793 = vpop.f32.mrb[0].mxu0
        %v794 = vpop.f32.mrb[0].mxu0
        %v795 = vadd.f32 %v528, %v794
        %v796 = vpop.f32.mrb[0].mxu0
        %797 = vdwg.mxu0
        %v798 = vpack.c.bf16 %v472, %v471
        %v799 = vpack.c.bf16 %v474, %v473
        %v800 = vpack.c.bf16 %v476, %v475
        %v801 = vpack.c.bf16 %v478, %v477
        %v802 = vld [vmem:[#allocation11] sm:$0xff]
        %v803 = vld [vmem:[#allocation11 + $0x8] sm:$0xf]
        %v804 = vld [vmem:[#allocation11 + $0xc] sm:$0xff]
        %v805 = vld [vmem:[#allocation11 + $0x14] sm:$0xf]
        %v806 = vld [vmem:[#allocation11 + $0x18] sm:$0xff]
        %v807 = vld [vmem:[#allocation11 + $0x20] sm:$0xf]
        %v808 = vld [vmem:[#allocation11 + $0x24] sm:$0xff]
        %v809 = vld [vmem:[#allocation11 + $0x2c] sm:$0xf]
        %v810 = vld [vmem:[#allocation11 + $0x30] sm:$0xff]
        %v811 = vld [vmem:[#allocation11 + $0x38] sm:$0xf]
        %v812 = vld [vmem:[#allocation11 + $0x3c] sm:$0xff]
        %v813 = vld [vmem:[#allocation11 + $0x44] sm:$0xf]
        %v814 = vld [vmem:[#allocation11 + $0x48] sm:$0xff]
        %v815 = vld [vmem:[#allocation11 + $0x50] sm:$0xf]
        %v816 = vld [vmem:[#allocation11 + $0x54] sm:$0xff]
        %v817 = vld [vmem:[#allocation11 + $0x5c] sm:$0xf]
        %v818 = vld [vmem:[#allocation11 + $0x60] sm:$0xff]
        %v819 = vld [vmem:[#allocation11 + $0x68] sm:$0xf]
        %v820 = vld [vmem:[#allocation11 + $0x6c] sm:$0xff]
        %v821 = vld [vmem:[#allocation11 + $0x74] sm:$0xf]
        %v822 = vld [vmem:[#allocation11 + $0x78] sm:$0xff]
        %v823 = vld [vmem:[#allocation11 + $0x80] sm:$0xf]
        %v824 = vld [vmem:[#allocation11 + $0x84] sm:$0xff]
        %v825 = vld [vmem:[#allocation11 + $0x8c] sm:$0xf]
        %v826 = vld [vmem:[#allocation11 + $0x90] sm:$0xff]
        %v827 = vld [vmem:[#allocation11 + $0x98] sm:$0xf]
        %v828 = vld [vmem:[#allocation11 + $0x9c] sm:$0xff]
        %v829 = vld [vmem:[#allocation11 + $0xa4] sm:$0xf]
        %v830 = vld [vmem:[#allocation11 + $0xa8] sm:$0xff]
        %v831 = vld [vmem:[#allocation11 + $0xb0] sm:$0xf]
        %v832 = vld [vmem:[#allocation11 + $0xb4] sm:$0xff]
        %v833 = vld [vmem:[#allocation11 + $0xbc] sm:$0xf]
        %v834 = vld [vmem:[%s6] sm:$0x7]
        %v836 = vlaneseq
        %v837 = vshrl.u32 %v836, 7
        %v838 = vsub.s32 0, %v837
        %v839 = vrot.slane %v834, %v838
        %v840 = vlaneseq
        %v841 = vshrl.u32 %v840, 7
        %v842 = vsub.s32 1, %v841
        %v843 = vrot.slane %v834, %v842
        %v844 = vlaneseq
        %v845 = vshrl.u32 %v844, 7
        %v846 = vsub.s32 2, %v845
        %v847 = vrot.slane %v834, %v846
        %v883 = vunpack.c.l.b16 %v802
        %v884 = vunpack.c.h.b16 %v802
        %v885 = vunpack.c.l.b16 %v803
        %v886 = vunpack.c.l.b16 %v804
        %v887 = vunpack.c.h.b16 %v804
        %v888 = vunpack.c.l.b16 %v805
        %v889 = vunpack.c.l.b16 %v806
        %v890 = vunpack.c.h.b16 %v806
        %v891 = vunpack.c.l.b16 %v807
        %v892 = vunpack.c.l.b16 %v808
        %v893 = vunpack.c.h.b16 %v808
        %v894 = vunpack.c.l.b16 %v809
        %v895 = vunpack.c.l.b16 %v810
        %v896 = vunpack.c.h.b16 %v810
        %v897 = vunpack.c.l.b16 %v811
        %v898 = vunpack.c.l.b16 %v812
        %v899 = vunpack.c.h.b16 %v812
        %v900 = vunpack.c.l.b16 %v813
        %v901 = vunpack.c.l.b16 %v814
        %v902 = vunpack.c.h.b16 %v814
        %v903 = vunpack.c.l.b16 %v815
        %v904 = vunpack.c.l.b16 %v816
        %v905 = vunpack.c.h.b16 %v816
        %v906 = vunpack.c.l.b16 %v817
        %v907 = vunpack.c.l.b16 %v818
        %v908 = vunpack.c.h.b16 %v818
        %v909 = vunpack.c.l.b16 %v819
        %v910 = vunpack.c.l.b16 %v820
        %v911 = vunpack.c.h.b16 %v820
        %v912 = vunpack.c.l.b16 %v821
        %v913 = vunpack.c.l.b16 %v822
        %v914 = vunpack.c.h.b16 %v822
        %v915 = vunpack.c.l.b16 %v823
        %v916 = vunpack.c.l.b16 %v824
        %v917 = vunpack.c.h.b16 %v824
        %v918 = vunpack.c.l.b16 %v825
        %v919 = vunpack.c.l.b16 %v826
        %v920 = vunpack.c.h.b16 %v826
        %v921 = vunpack.c.l.b16 %v827
        %v922 = vunpack.c.l.b16 %v828
        %v923 = vunpack.c.h.b16 %v828
        %v924 = vunpack.c.l.b16 %v829
        %v925 = vunpack.c.l.b16 %v830
        %v926 = vunpack.c.h.b16 %v830
        %v927 = vunpack.c.l.b16 %v831
        %v928 = vunpack.c.l.b16 %v832
        %v929 = vunpack.c.h.b16 %v832
        %v930 = vunpack.c.l.b16 %v833
        %v931 = vpack.c.b16 %v886, %v883
        %v932 = vpack.c.b16 %v887, %v884
        %v933 = vpack.c.b16 %v888, %v885
        %v934 = vpack.c.b16 %v892, %v889
        %v935 = vpack.c.b16 %v893, %v890
        %v936 = vpack.c.b16 %v894, %v891
        %v937 = vpack.c.b16 %v898, %v895
        %v938 = vpack.c.b16 %v899, %v896
        %v939 = vpack.c.b16 %v900, %v897
        %v940 = vpack.c.b16 %v904, %v901
        %v941 = vpack.c.b16 %v905, %v902
        %v942 = vpack.c.b16 %v906, %v903
        %v943 = vpack.c.b16 %v910, %v907
        %v944 = vpack.c.b16 %v911, %v908
        %v945 = vpack.c.b16 %v912, %v909
        %v946 = vpack.c.b16 %v916, %v913
        %v947 = vpack.c.b16 %v917, %v914
        %v948 = vpack.c.b16 %v918, %v915
        %v949 = vpack.c.b16 %v922, %v919
        %v950 = vpack.c.b16 %v923, %v920
        %v951 = vpack.c.b16 %v924, %v921
        %v952 = vpack.c.b16 %v928, %v925
        %v953 = vpack.c.b16 %v929, %v926
        %v954 = vpack.c.b16 %v930, %v927
        %979 = vmatprep.subr.bf16.mxu0 %v932
        %980 = vmatpush1.bf16.msra.mxu0 %v931
        %981 = vmatprep.subr.bf16.mxu0 %v935
        %982 = vmatpush1.bf16.msra.mxu0 %v934
        %983 = vmatprep.subr.bf16.mxu0 %v938
        %984 = vmatpush1.bf16.msra.mxu0 %v937
        %985 = vmatprep.subr.bf16.mxu0 %v941
        %986 = vmatpush1.bf16.msra.mxu0 %v940
        %987 = vmatprep.subr.bf16.mxu0 %v944
        %988 = vmatpush1.bf16.msra.mxu0 %v943
        %989 = vmatprep.subr.bf16.mxu0 %v947
        %990 = vmatpush1.bf16.msra.mxu0 %v946
        %991 = vmatprep.subr.bf16.mxu0 %v950
        %992 = vmatpush1.bf16.msra.mxu0 %v949
        %993 = vmatprep.subr.bf16.mxu0 %v953
        %994 = vmatpush1.bf16.msra.mxu0 %v952
        %995 = vmatprep.subr.bf16.mxu0 0
        %996 = vmatpush1.bf16.msra.mxu0 0
        %997 = vmatprep.subr.bf16.mxu0 0
        %998 = vmatpush1.bf16.msra.mxu0 0
        %999 = vmatprep.subr.bf16.mxu0 0
        %1000 = vmatpush1.bf16.msra.mxu0 0
        %1001 = vmatprep.subr.bf16.mxu0 0
        %1002 = vmatpush1.bf16.msra.mxu0 0
        %1003 = vmatprep.subr.bf16.mxu0 0
        %1004 = vmatpush1.bf16.msra.mxu0 0
        %1005 = vmatprep.subr.bf16.mxu0 0
        %1006 = vmatpush1.bf16.msra.mxu0 0
        %1007 = vmatprep.subr.bf16.mxu0 0
        %1008 = vmatpush1.bf16.msra.mxu0 0
        %1009 = vmatprep.subr.bf16.mxu0 0
        %1010 = vmatpush1.bf16.msra.mxu0 0
        %1011 = vmatprep.mubr.bf16.mxu0 0
        %1012 = vmatmul.mubr.bf16.gmra.mrb[0].mxu0 %v798
        %v1013 = vpop.f32.mrb[0].mxu0
        %v1014 = vadd.f32 %v839, %v1013
        %v1015 = vpop.f32.mrb[0].mxu0
        %v1016 = vadd.f32 %v843, %v1015
        %v1017 = vpop.f32.mrb[0].mxu0
        %v1018 = vadd.f32 %v839, %v1017
        %v1019 = vpop.f32.mrb[0].mxu0
        %v1020 = vadd.f32 %v843, %v1019
        %1021 = vmatprep.mubr.bf16.mxu0 0
        %1022 = vmatmul.mubr.bf16.gmra.mrb[0].mxu0 %v799
        %v1023 = vpop.f32.mrb[0].mxu0
        %v1024 = vadd.f32 %v839, %v1023
        %v1025 = vpop.f32.mrb[0].mxu0
        %v1026 = vadd.f32 %v843, %v1025
        %v1027 = vpop.f32.mrb[0].mxu0
        %v1028 = vadd.f32 %v839, %v1027
        %v1029 = vpop.f32.mrb[0].mxu0
        %v1030 = vadd.f32 %v843, %v1029
        %1031 = vmatprep.mubr.bf16.mxu0 0
        %1032 = vmatmul.mubr.bf16.gmra.mrb[0].mxu0 %v800
        %v1033 = vpop.f32.mrb[0].mxu0
        %v1034 = vadd.f32 %v839, %v1033
        %v1035 = vpop.f32.mrb[0].mxu0
        %v1036 = vadd.f32 %v843, %v1035
        %v1037 = vpop.f32.mrb[0].mxu0
        %v1038 = vadd.f32 %v839, %v1037
        %v1039 = vpop.f32.mrb[0].mxu0
        %v1040 = vadd.f32 %v843, %v1039
        %1041 = vmatprep.mubr.bf16.mxu0 0
        %1042 = vmatmul.mubr.bf16.gmra.mrb[0].mxu0 %v801
        %v1043 = vpop.f32.mrb[0].mxu0
        %v1044 = vadd.f32 %v839, %v1043
        %v1045 = vpop.f32.mrb[0].mxu0
        %v1046 = vadd.f32 %v843, %v1045
        %v1047 = vpop.f32.mrb[0].mxu0
        %v1048 = vadd.f32 %v839, %v1047
        %v1049 = vpop.f32.mrb[0].mxu0
        %v1050 = vadd.f32 %v843, %v1049
        %1051 = vdwg.mxu0
        %1052 = vmatprep.subr.bf16.mxu0 0
        %1053 = vmatpush1.bf16.msra.mxu0 %v933
        %1054 = vmatprep.subr.bf16.mxu0 0
        %1055 = vmatpush1.bf16.msra.mxu0 %v936
        %1056 = vmatprep.subr.bf16.mxu0 0
        %1057 = vmatpush1.bf16.msra.mxu0 %v939
        %1058 = vmatprep.subr.bf16.mxu0 0
        %1059 = vmatpush1.bf16.msra.mxu0 %v942
        %1060 = vmatprep.subr.bf16.mxu0 0
        %1061 = vmatpush1.bf16.msra.mxu0 %v945
        %1062 = vmatprep.subr.bf16.mxu0 0
        %1063 = vmatpush1.bf16.msra.mxu0 %v948
        %1064 = vmatprep.subr.bf16.mxu0 0
        %1065 = vmatpush1.bf16.msra.mxu0 %v951
        %1066 = vmatprep.subr.bf16.mxu0 0
        %1067 = vmatpush1.bf16.msra.mxu0 %v954
        %1068 = vmatprep.subr.bf16.mxu0 0
        %1069 = vmatpush1.bf16.msra.mxu0 0
        %1070 = vmatprep.subr.bf16.mxu0 0
        %1071 = vmatpush1.bf16.msra.mxu0 0
        %1072 = vmatprep.subr.bf16.mxu0 0
        %1073 = vmatpush1.bf16.msra.mxu0 0
        %1074 = vmatprep.subr.bf16.mxu0 0
        %1075 = vmatpush1.bf16.msra.mxu0 0
        %1076 = vmatprep.subr.bf16.mxu0 0
        %1077 = vmatpush1.bf16.msra.mxu0 0
        %1078 = vmatprep.subr.bf16.mxu0 0
        %1079 = vmatpush1.bf16.msra.mxu0 0
        %1080 = vmatprep.subr.bf16.mxu0 0
        %1081 = vmatpush1.bf16.msra.mxu0 0
        %1082 = vmatprep.subr.bf16.mxu0 0
        %1083 = vmatpush1.bf16.msra.mxu0 0
        %1084 = vmatprep.mubr.bf16.mxu0 0
        %1085 = vmatmul.mubr.bf16.gmra.mrb[0].mxu0 %v798
        %v1086 = vpop.f32.mrb[0].mxu0
        %v1087 = vadd.f32 %v847, %v1086
        %v1088 = vpop.f32.mrb[0].mxu0
        %v1089 = vpop.f32.mrb[0].mxu0
        %v1090 = vadd.f32 %v847, %v1089
        %v1091 = vpop.f32.mrb[0].mxu0
        %1092 = vmatprep.mubr.bf16.mxu0 0
        %1093 = vmatmul.mubr.bf16.gmra.mrb[0].mxu0 %v799
        %v1094 = vpop.f32.mrb[0].mxu0
        %v1095 = vadd.f32 %v847, %v1094
        %v1096 = vpop.f32.mrb[0].mxu0
        %v1097 = vpop.f32.mrb[0].mxu0
        %v1098 = vadd.f32 %v847, %v1097
        %v1099 = vpop.f32.mrb[0].mxu0
        %1100 = vmatprep.mubr.bf16.mxu0 0
        %1101 = vmatmul.mubr.bf16.gmra.mrb[0].mxu0 %v800
        %v1102 = vpop.f32.mrb[0].mxu0
        %v1103 = vadd.f32 %v847, %v1102
        %v1104 = vpop.f32.mrb[0].mxu0
        %v1105 = vpop.f32.mrb[0].mxu0
        %v1106 = vadd.f32 %v847, %v1105
        %v1107 = vpop.f32.mrb[0].mxu0
        %1108 = vmatprep.mubr.bf16.mxu0 0
        %1109 = vmatmul.mubr.bf16.gmra.mrb[0].mxu0 %v801
        %v1110 = vpop.f32.mrb[0].mxu0
        %v1111 = vadd.f32 %v847, %v1110
        %v1112 = vpop.f32.mrb[0].mxu0
        %v1113 = vpop.f32.mrb[0].mxu0
        %v1114 = vadd.f32 %v847, %v1113
        %v1115 = vpop.f32.mrb[0].mxu0
        %1116 = vdwg.mxu0
        %v1117 = vadd.f32 %v695, %v1014
        %v1118 = vadd.f32 %v699, %v1018
        %v1119 = vadd.f32 %v705, %v1024
        %v1120 = vadd.f32 %v709, %v1028
        %v1121 = vadd.f32 %v715, %v1034
        %v1122 = vadd.f32 %v719, %v1038
        %v1123 = vadd.f32 %v725, %v1044
        %v1124 = vadd.f32 %v729, %v1048
        %v1125 = vxor.u32 %v1117, 2147483648
        %v1126 = vxor.u32 %v1118, 2147483648
        %v1127 = vxor.u32 %v1119, 2147483648
        %v1128 = vxor.u32 %v1120, 2147483648
        %v1129 = vxor.u32 %v1121, 2147483648
        %v1130 = vxor.u32 %v1122, 2147483648
        %v1131 = vxor.u32 %v1123, 2147483648
        %v1132 = vxor.u32 %v1124, 2147483648
        %v1133 = vmul.f32 %v1125, 1.442695
        %v1134 = vpow.pop %v1133
        %v1135 = vmul.f32 %v1126, 1.442695
        %v1136 = vpow.pop %v1135
        %v1137 = vmul.f32 %v1127, 1.442695
        %v1138 = vpow.pop %v1137
        %v1139 = vmul.f32 %v1128, 1.442695
        %v1140 = vpow.pop %v1139
        %v1141 = vmul.f32 %v1129, 1.442695
        %v1142 = vpow.pop %v1141
        %v1143 = vmul.f32 %v1130, 1.442695
        %v1144 = vpow.pop %v1143
        %v1145 = vmul.f32 %v1131, 1.442695
        %v1146 = vpow.pop %v1145
        %v1147 = vmul.f32 %v1132, 1.442695
        %v1148 = vpow.pop %v1147
        %v1149 = vadd.f32 %v1134, 1.0
        %v1150 = vadd.f32 %v1136, 1.0
        %v1151 = vadd.f32 %v1138, 1.0
        %v1152 = vadd.f32 %v1140, 1.0
        %v1153 = vadd.f32 %v1142, 1.0
        %v1154 = vadd.f32 %v1144, 1.0
        %v1155 = vadd.f32 %v1146, 1.0
        %v1156 = vadd.f32 %v1148, 1.0
        %v1157 = vrcp.pop %v1149
        %v1158 = vmul.f32 1.0, %v1157
        %v1159 = vrcp.pop %v1150
        %v1160 = vmul.f32 1.0, %v1159
        %v1161 = vrcp.pop %v1151
        %v1162 = vmul.f32 1.0, %v1161
        %v1163 = vrcp.pop %v1152
        %v1164 = vmul.f32 1.0, %v1163
        %v1165 = vrcp.pop %v1153
        %v1166 = vmul.f32 1.0, %v1165
        %v1167 = vrcp.pop %v1154
        %v1168 = vmul.f32 1.0, %v1167
        %v1169 = vrcp.pop %v1155
        %v1170 = vmul.f32 1.0, %v1169
        %v1171 = vrcp.pop %v1156
        %v1172 = vmul.f32 1.0, %v1171
        %v1173 = vadd.f32 %v697, %v1016
        %v1174 = vadd.f32 %v701, %v1020
        %v1175 = vadd.f32 %v707, %v1026
        %v1176 = vadd.f32 %v711, %v1030
        %v1177 = vadd.f32 %v717, %v1036
        %v1178 = vadd.f32 %v721, %v1040
        %v1179 = vadd.f32 %v727, %v1046
        %v1180 = vadd.f32 %v731, %v1050
        %v1181 = vxor.u32 %v1173, 2147483648
        %v1182 = vxor.u32 %v1174, 2147483648
        %v1183 = vxor.u32 %v1175, 2147483648
        %v1184 = vxor.u32 %v1176, 2147483648
        %v1185 = vxor.u32 %v1177, 2147483648
        %v1186 = vxor.u32 %v1178, 2147483648
        %v1187 = vxor.u32 %v1179, 2147483648
        %v1188 = vxor.u32 %v1180, 2147483648
        %v1189 = vmul.f32 %v1181, 1.442695
        %v1190 = vpow.pop %v1189
        %v1191 = vmul.f32 %v1182, 1.442695
        %v1192 = vpow.pop %v1191
        %v1193 = vmul.f32 %v1183, 1.442695
        %v1194 = vpow.pop %v1193
        %v1195 = vmul.f32 %v1184, 1.442695
        %v1196 = vpow.pop %v1195
        %v1197 = vmul.f32 %v1185, 1.442695
        %v1198 = vpow.pop %v1197
        %v1199 = vmul.f32 %v1186, 1.442695
        %v1200 = vpow.pop %v1199
        %v1201 = vmul.f32 %v1187, 1.442695
        %v1202 = vpow.pop %v1201
        %v1203 = vmul.f32 %v1188, 1.442695
        %v1204 = vpow.pop %v1203
        %v1205 = vadd.f32 %v1190, 1.0
        %v1206 = vadd.f32 %v1192, 1.0
        %v1207 = vadd.f32 %v1194, 1.0
        %v1208 = vadd.f32 %v1196, 1.0
        %v1209 = vadd.f32 %v1198, 1.0
        %v1210 = vadd.f32 %v1200, 1.0
        %v1211 = vadd.f32 %v1202, 1.0
        %v1212 = vadd.f32 %v1204, 1.0
        %v1213 = vrcp.pop %v1205
        %v1214 = vmul.f32 1.0, %v1213
        %v1215 = vrcp.pop %v1206
        %v1216 = vmul.f32 1.0, %v1215
        %v1217 = vrcp.pop %v1207
        %v1218 = vmul.f32 1.0, %v1217
        %v1219 = vrcp.pop %v1208
        %v1220 = vmul.f32 1.0, %v1219
        %v1221 = vrcp.pop %v1209
        %v1222 = vmul.f32 1.0, %v1221
        %v1223 = vrcp.pop %v1210
        %v1224 = vmul.f32 1.0, %v1223
        %v1225 = vrcp.pop %v1211
        %v1226 = vmul.f32 1.0, %v1225
        %v1227 = vrcp.pop %v1212
        %v1228 = vmul.f32 1.0, %v1227
        %v1229 = vmul.f32 %v1158, %v1087
        %v1230 = vmul.f32 %v1160, %v1090
        %v1231 = vmul.f32 %v1162, %v1095
        %v1232 = vmul.f32 %v1164, %v1098
        %v1233 = vmul.f32 %v1166, %v1103
        %v1234 = vmul.f32 %v1168, %v1106
        %v1235 = vmul.f32 %v1170, %v1111
        %v1236 = vmul.f32 %v1172, %v1114
        %v1237 = vadd.f32 %v768, %v1229
        %v1238 = vadd.f32 %v771, %v1230
        %v1239 = vadd.f32 %v776, %v1231
        %v1240 = vadd.f32 %v779, %v1232
        %v1241 = vadd.f32 %v784, %v1233
        %v1242 = vadd.f32 %v787, %v1234
        %v1243 = vadd.f32 %v792, %v1235
        %v1244 = vadd.f32 %v795, %v1236
        %v1245 = vtanh.pop %v1237
        %v1246 = vtanh.pop %v1238
        %v1247 = vtanh.pop %v1239
        %v1248 = vtanh.pop %v1240
        %v1249 = vtanh.pop %v1241
        %v1250 = vtanh.pop %v1242
        %v1251 = vtanh.pop %v1243
        %v1252 = vtanh.pop %v1244
        %v1253 = vsub.f32 1.0, %v1214
        %v1254 = vsub.f32 1.0, %v1216
        %v1255 = vsub.f32 1.0, %v1218
        %v1256 = vsub.f32 1.0, %v1220
        %v1257 = vsub.f32 1.0, %v1222
        %v1258 = vsub.f32 1.0, %v1224
        %v1259 = vsub.f32 1.0, %v1226
        %v1260 = vsub.f32 1.0, %v1228
        %v1261 = vmul.f32 %v1253, %v1245
        %v1262 = vmul.f32 %v1254, %v1246
        %v1263 = vmul.f32 %v1255, %v1247
        %v1264 = vmul.f32 %v1256, %v1248
        %v1265 = vmul.f32 %v1257, %v1249
        %v1266 = vmul.f32 %v1258, %v1250
        %v1267 = vmul.f32 %v1259, %v1251
        %v1268 = vmul.f32 %v1260, %v1252
        %v1269 = vmul.f32 %v1214, %v471
        %v1270 = vmul.f32 %v1216, %v472
        %v1271 = vmul.f32 %v1218, %v473
        %v1272 = vmul.f32 %v1220, %v474
        %v1273 = vmul.f32 %v1222, %v475
        %v1274 = vmul.f32 %v1224, %v476
        %v1275 = vmul.f32 %v1226, %v477
        %v1276 = vmul.f32 %v1228, %v478
        %v1277 = vadd.f32 %v1261, %v1269
        %v1278 = vadd.f32 %v1262, %v1270
        %v1279 = vadd.f32 %v1263, %v1271
        %v1280 = vadd.f32 %v1264, %v1272
        %v1281 = vadd.f32 %v1265, %v1273
        %v1282 = vadd.f32 %v1266, %v1274
        %v1283 = vadd.f32 %v1267, %v1275
        %v1284 = vadd.f32 %v1268, %v1276
        %v1285 = vpack.c.bf16 %v1278, %v1277
        %v1286 = vpack.c.bf16 %v1280, %v1279
        %v1287 = vpack.c.bf16 %v1282, %v1281
        %v1288 = vpack.c.bf16 %v1284, %v1283
        %v1289 = vld [vmem:[#allocation12] sm:$0xff]
        %v1290 = vld [vmem:[#allocation12 + $0x8] sm:$0xff]
        %v1291 = vld [vmem:[#allocation12 + $0x10] sm:$0xff]
        %v1292 = vld [vmem:[#allocation12 + $0x18] sm:$0xff]
        %v1293 = vld [vmem:[#allocation12 + $0x20] sm:$0xff]
        %v1294 = vld [vmem:[#allocation12 + $0x28] sm:$0xff]
        %v1295 = vld [vmem:[#allocation12 + $0x30] sm:$0xff]
        %v1296 = vld [vmem:[#allocation12 + $0x38] sm:$0xff]
        %v1297 = vld [vmem:[#allocation12 + $0x40] sm:$0xff]
        %v1298 = vld [vmem:[#allocation12 + $0x48] sm:$0xff]
        %v1299 = vld [vmem:[#allocation12 + $0x50] sm:$0xff]
        %v1300 = vld [vmem:[#allocation12 + $0x58] sm:$0xff]
        %v1301 = vld [vmem:[#allocation12 + $0x60] sm:$0xff]
        %v1302 = vld [vmem:[#allocation12 + $0x68] sm:$0xff]
        %v1303 = vld [vmem:[#allocation12 + $0x70] sm:$0xff]
        %v1304 = vld [vmem:[#allocation12 + $0x78] sm:$0xff]
        %v1305 = vld [vmem:[%s8] sm:$0x3]
        %v1307 = vlaneseq
        %v1308 = vshrl.u32 %v1307, 7
        %v1309 = vsub.s32 0, %v1308
        %v1310 = vrot.slane %v1305, %v1309
        %v1311 = vlaneseq
        %v1312 = vshrl.u32 %v1311, 7
        %v1313 = vsub.s32 1, %v1312
        %v1314 = vrot.slane %v1305, %v1313
        %v1333 = vunpack.c.l.b16 %v1289
        %v1334 = vunpack.c.h.b16 %v1289
        %v1335 = vunpack.c.l.b16 %v1290
        %v1336 = vunpack.c.h.b16 %v1290
        %v1337 = vunpack.c.l.b16 %v1291
        %v1338 = vunpack.c.h.b16 %v1291
        %v1339 = vunpack.c.l.b16 %v1292
        %v1340 = vunpack.c.h.b16 %v1292
        %v1341 = vunpack.c.l.b16 %v1293
        %v1342 = vunpack.c.h.b16 %v1293
        %v1343 = vunpack.c.l.b16 %v1294
        %v1344 = vunpack.c.h.b16 %v1294
        %v1345 = vunpack.c.l.b16 %v1295
        %v1346 = vunpack.c.h.b16 %v1295
        %v1347 = vunpack.c.l.b16 %v1296
        %v1348 = vunpack.c.h.b16 %v1296
        %v1349 = vunpack.c.l.b16 %v1297
        %v1350 = vunpack.c.h.b16 %v1297
        %v1351 = vunpack.c.l.b16 %v1298
        %v1352 = vunpack.c.h.b16 %v1298
        %v1353 = vunpack.c.l.b16 %v1299
        %v1354 = vunpack.c.h.b16 %v1299
        %v1355 = vunpack.c.l.b16 %v1300
        %v1356 = vunpack.c.h.b16 %v1300
        %v1357 = vunpack.c.l.b16 %v1301
        %v1358 = vunpack.c.h.b16 %v1301
        %v1359 = vunpack.c.l.b16 %v1302
        %v1360 = vunpack.c.h.b16 %v1302
        %v1361 = vunpack.c.l.b16 %v1303
        %v1362 = vunpack.c.h.b16 %v1303
        %v1363 = vunpack.c.l.b16 %v1304
        %v1364 = vunpack.c.h.b16 %v1304
        %v1365 = vpack.c.b16 %v1335, %v1333
        %v1366 = vpack.c.b16 %v1336, %v1334
        %v1367 = vpack.c.b16 %v1339, %v1337
        %v1368 = vpack.c.b16 %v1340, %v1338
        %v1369 = vpack.c.b16 %v1343, %v1341
        %v1370 = vpack.c.b16 %v1344, %v1342
        %v1371 = vpack.c.b16 %v1347, %v1345
        %v1372 = vpack.c.b16 %v1348, %v1346
        %v1373 = vpack.c.b16 %v1351, %v1349
        %v1374 = vpack.c.b16 %v1352, %v1350
        %v1375 = vpack.c.b16 %v1355, %v1353
        %v1376 = vpack.c.b16 %v1356, %v1354
        %v1377 = vpack.c.b16 %v1359, %v1357
        %v1378 = vpack.c.b16 %v1360, %v1358
        %v1379 = vpack.c.b16 %v1363, %v1361
        %v1380 = vpack.c.b16 %v1364, %v1362
        %1397 = vmatprep.subr.bf16.mxu0 %v1366
        %1398 = vmatpush1.bf16.msra.mxu0 %v1365
        %1399 = vmatprep.subr.bf16.mxu0 %v1368
        %1400 = vmatpush1.bf16.msra.mxu0 %v1367
        %1401 = vmatprep.subr.bf16.mxu0 %v1370
        %1402 = vmatpush1.bf16.msra.mxu0 %v1369
        %1403 = vmatprep.subr.bf16.mxu0 %v1372
        %1404 = vmatpush1.bf16.msra.mxu0 %v1371
        %1405 = vmatprep.subr.bf16.mxu0 %v1374
        %1406 = vmatpush1.bf16.msra.mxu0 %v1373
        %1407 = vmatprep.subr.bf16.mxu0 %v1376
        %1408 = vmatpush1.bf16.msra.mxu0 %v1375
        %1409 = vmatprep.subr.bf16.mxu0 %v1378
        %1410 = vmatpush1.bf16.msra.mxu0 %v1377
        %1411 = vmatprep.subr.bf16.mxu0 %v1380
        %1412 = vmatpush1.bf16.msra.mxu0 %v1379
        %1413 = vmatprep.subr.bf16.mxu0 0
        %1414 = vmatpush1.bf16.msra.mxu0 0
        %1415 = vmatprep.subr.bf16.mxu0 0
        %1416 = vmatpush1.bf16.msra.mxu0 0
        %1417 = vmatprep.subr.bf16.mxu0 0
        %1418 = vmatpush1.bf16.msra.mxu0 0
        %1419 = vmatprep.subr.bf16.mxu0 0
        %1420 = vmatpush1.bf16.msra.mxu0 0
        %1421 = vmatprep.subr.bf16.mxu0 0
        %1422 = vmatpush1.bf16.msra.mxu0 0
        %1423 = vmatprep.subr.bf16.mxu0 0
        %1424 = vmatpush1.bf16.msra.mxu0 0
        %1425 = vmatprep.subr.bf16.mxu0 0
        %1426 = vmatpush1.bf16.msra.mxu0 0
        %1427 = vmatprep.subr.bf16.mxu0 0
        %1428 = vmatpush1.bf16.msra.mxu0 0
        %1429 = vmatprep.mubr.bf16.mxu0 0
        %1430 = vmatmul.mubr.bf16.gmra.mrb[0].mxu0 %v1285
        %v1431 = vpop.f32.mrb[0].mxu0
        %v1432 = vadd.f32 %v1310, %v1431
        %v1433 = vpop.f32.mrb[0].mxu0
        %v1434 = vadd.f32 %v1314, %v1433
        %v1435 = vpop.f32.mrb[0].mxu0
        %v1436 = vadd.f32 %v1310, %v1435
        %v1437 = vpop.f32.mrb[0].mxu0
        %v1438 = vadd.f32 %v1314, %v1437
        %1439 = vmatprep.mubr.bf16.mxu0 0
        %1440 = vmatmul.mubr.bf16.gmra.mrb[0].mxu0 %v1286
        %v1441 = vpop.f32.mrb[0].mxu0
        %v1442 = vadd.f32 %v1310, %v1441
        %v1443 = vpop.f32.mrb[0].mxu0
        %v1444 = vadd.f32 %v1314, %v1443
        %v1445 = vpop.f32.mrb[0].mxu0
        %v1446 = vadd.f32 %v1310, %v1445
        %v1447 = vpop.f32.mrb[0].mxu0
        %v1448 = vadd.f32 %v1314, %v1447
        %1449 = vmatprep.mubr.bf16.mxu0 0
        %1450 = vmatmul.mubr.bf16.gmra.mrb[0].mxu0 %v1287
        %v1451 = vpop.f32.mrb[0].mxu0
        %v1452 = vadd.f32 %v1310, %v1451
        %v1453 = vpop.f32.mrb[0].mxu0
        %v1454 = vadd.f32 %v1314, %v1453
        %v1455 = vpop.f32.mrb[0].mxu0
        %v1456 = vadd.f32 %v1310, %v1455
        %v1457 = vpop.f32.mrb[0].mxu0
        %v1458 = vadd.f32 %v1314, %v1457
        %1459 = vmatprep.mubr.bf16.mxu0 0
        %1460 = vmatmul.mubr.bf16.gmra.mrb[0].mxu0 %v1288
        %v1461 = vpop.f32.mrb[0].mxu0
        %v1462 = vadd.f32 %v1310, %v1461
        %v1463 = vpop.f32.mrb[0].mxu0
        %v1464 = vadd.f32 %v1314, %v1463
        %v1465 = vpop.f32.mrb[0].mxu0
        %v1466 = vadd.f32 %v1310, %v1465
        %v1467 = vpop.f32.mrb[0].mxu0
        %v1468 = vadd.f32 %v1314, %v1467
        %1469 = vdwg.mxu0
        %v1470 = vmax.f32 %v1432, %v1434
        %1471 = vmax.xlane.f32.xlu0 %v1470
        %v1472 = vpop.xlane.xlu0 %1471
        %v1473 = vmax.f32 %v1436, %v1438
        %1474 = vmax.xlane.f32.xlu0 %v1473
        %v1475 = vpop.xlane.xlu0 %1474
        %v1476 = vmax.f32 %v1442, %v1444
        %1477 = vmax.xlane.f32.xlu0 %v1476
        %v1478 = vpop.xlane.xlu0 %1477
        %v1479 = vmax.f32 %v1446, %v1448
        %1480 = vmax.xlane.f32.xlu0 %v1479
        %v1481 = vpop.xlane.xlu0 %1480
        %v1482 = vmax.f32 %v1452, %v1454
        %1483 = vmax.xlane.f32.xlu0 %v1482
        %v1484 = vpop.xlane.xlu0 %1483
        %v1485 = vmax.f32 %v1456, %v1458
        %1486 = vmax.xlane.f32.xlu0 %v1485
        %v1487 = vpop.xlane.xlu0 %1486
        %v1488 = vmax.f32 %v1462, %v1464
        %1489 = vmax.xlane.f32.xlu0 %v1488
        %v1490 = vpop.xlane.xlu0 %1489
        %v1491 = vmax.f32 %v1466, %v1468
        %1492 = vmax.xlane.f32.xlu0 %v1491
        %v1493 = vpop.xlane.xlu0 %1492
        %v1494 = vsub.f32 %v1432, %v1472
        %v1495 = vsub.f32 %v1434, %v1472
        %v1496 = vsub.f32 %v1436, %v1475
        %v1497 = vsub.f32 %v1438, %v1475
        %v1498 = vsub.f32 %v1442, %v1478
        %v1499 = vsub.f32 %v1444, %v1478
        %v1500 = vsub.f32 %v1446, %v1481
        %v1501 = vsub.f32 %v1448, %v1481
        %v1502 = vsub.f32 %v1452, %v1484
        %v1503 = vsub.f32 %v1454, %v1484
        %v1504 = vsub.f32 %v1456, %v1487
        %v1505 = vsub.f32 %v1458, %v1487
        %v1506 = vsub.f32 %v1462, %v1490
        %v1507 = vsub.f32 %v1464, %v1490
        %v1508 = vsub.f32 %v1466, %v1493
        %v1509 = vsub.f32 %v1468, %v1493
        %v1510 = vmul.f32 %v1494, 1.442695
        %v1511 = vpow.pop %v1510
        %v1512 = vmul.f32 %v1495, 1.442695
        %v1513 = vpow.pop %v1512
        %v1514 = vmul.f32 %v1496, 1.442695
        %v1515 = vpow.pop %v1514
        %v1516 = vmul.f32 %v1497, 1.442695
        %v1517 = vpow.pop %v1516
        %v1518 = vmul.f32 %v1498, 1.442695
        %v1519 = vpow.pop %v1518
        %v1520 = vmul.f32 %v1499, 1.442695
        %v1521 = vpow.pop %v1520
        %v1522 = vmul.f32 %v1500, 1.442695
        %v1523 = vpow.pop %v1522
        %v1524 = vmul.f32 %v1501, 1.442695
        %v1525 = vpow.pop %v1524
        %v1526 = vmul.f32 %v1502, 1.442695
        %v1527 = vpow.pop %v1526
        %v1528 = vmul.f32 %v1503, 1.442695
        %v1529 = vpow.pop %v1528
        %v1530 = vmul.f32 %v1504, 1.442695
        %v1531 = vpow.pop %v1530
        %v1532 = vmul.f32 %v1505, 1.442695
        %v1533 = vpow.pop %v1532
        %v1534 = vmul.f32 %v1506, 1.442695
        %v1535 = vpow.pop %v1534
        %v1536 = vmul.f32 %v1507, 1.442695
        %v1537 = vpow.pop %v1536
        %v1538 = vmul.f32 %v1508, 1.442695
        %v1539 = vpow.pop %v1538
        %v1540 = vmul.f32 %v1509, 1.442695
        %v1541 = vpow.pop %v1540
        %v1542 = vadd.f32 %v1511, %v1513
        %1543 = vadd.xlane.f32.xlu0 %v1542
        %v1544 = vpop.xlane.xlu0 %1543
        %v1545 = vadd.f32 %v1515, %v1517
        %1546 = vadd.xlane.f32.xlu0 %v1545
        %v1547 = vpop.xlane.xlu0 %1546
        %v1548 = vadd.f32 %v1519, %v1521
        %1549 = vadd.xlane.f32.xlu0 %v1548
        %v1550 = vpop.xlane.xlu0 %1549
        %v1551 = vadd.f32 %v1523, %v1525
        %1552 = vadd.xlane.f32.xlu0 %v1551
        %v1553 = vpop.xlane.xlu0 %1552
        %v1554 = vadd.f32 %v1527, %v1529
        %1555 = vadd.xlane.f32.xlu0 %v1554
        %v1556 = vpop.xlane.xlu0 %1555
        %v1557 = vadd.f32 %v1531, %v1533
        %1558 = vadd.xlane.f32.xlu0 %v1557
        %v1559 = vpop.xlane.xlu0 %1558
        %v1560 = vadd.f32 %v1535, %v1537
        %1561 = vadd.xlane.f32.xlu0 %v1560
        %v1562 = vpop.xlane.xlu0 %1561
        %v1563 = vadd.f32 %v1539, %v1541
        %1564 = vadd.xlane.f32.xlu0 %v1563
        %v1565 = vpop.xlane.xlu0 %1564
        %v1566 = vlog2.pop %v1544
        %v1567 = vmul.f32 %v1566, 0.6931472
        %v1568 = vlog2.pop %v1547
        %v1569 = vmul.f32 %v1568, 0.6931472
        %v1570 = vlog2.pop %v1550
        %v1571 = vmul.f32 %v1570, 0.6931472
        %v1572 = vlog2.pop %v1553
        %v1573 = vmul.f32 %v1572, 0.6931472
        %v1574 = vlog2.pop %v1556
        %v1575 = vmul.f32 %v1574, 0.6931472
        %v1576 = vlog2.pop %v1559
        %v1577 = vmul.f32 %v1576, 0.6931472
        %v1578 = vlog2.pop %v1562
        %v1579 = vmul.f32 %v1578, 0.6931472
        %v1580 = vlog2.pop %v1565
        %v1581 = vmul.f32 %v1580, 0.6931472
        %v1582 = vadd.f32 %v1472, %v1567
        %v1583 = vadd.f32 %v1475, %v1569
        %v1584 = vadd.f32 %v1478, %v1571
        %v1585 = vadd.f32 %v1481, %v1573
        %v1586 = vadd.f32 %v1484, %v1575
        %v1587 = vadd.f32 %v1487, %v1577
        %v1588 = vadd.f32 %v1490, %v1579
        %v1589 = vadd.f32 %v1493, %v1581
        %v1590 = vsub.f32 %v1432, %v1582
        %v1591 = vsub.f32 %v1434, %v1582
        %v1592 = vsub.f32 %v1436, %v1583
        %v1593 = vsub.f32 %v1438, %v1583
        %v1594 = vsub.f32 %v1442, %v1584
        %v1595 = vsub.f32 %v1444, %v1584
        %v1596 = vsub.f32 %v1446, %v1585
        %v1597 = vsub.f32 %v1448, %v1585
        %v1598 = vsub.f32 %v1452, %v1586
        %v1599 = vsub.f32 %v1454, %v1586
        %v1600 = vsub.f32 %v1456, %v1587
        %v1601 = vsub.f32 %v1458, %v1587
        %v1602 = vsub.f32 %v1462, %v1588
        %v1603 = vsub.f32 %v1464, %v1588
        %v1604 = vsub.f32 %v1466, %v1589
        %v1605 = vsub.f32 %v1468, %v1589
        %1606 = vst [vmem:[%s379] sm:$0xff] %v1590
        %1607 = vst [vmem:[%s379 + $0x8] sm:$0xff] %v1591
        %1608 = vst [vmem:[%s379 + $0x10] sm:$0xff] %v1592
        %1609 = vst [vmem:[%s379 + $0x18] sm:$0xff] %v1593
        %1610 = vst [vmem:[%s379 + $0x20] sm:$0xff] %v1594
        %1611 = vst [vmem:[%s379 + $0x28] sm:$0xff] %v1595
        %1612 = vst [vmem:[%s379 + $0x30] sm:$0xff] %v1596
        %1613 = vst [vmem:[%s379 + $0x38] sm:$0xff] %v1597
        %1614 = vst [vmem:[%s379 + $0x40] sm:$0xff] %v1598
        %1615 = vst [vmem:[%s379 + $0x48] sm:$0xff] %v1599
        %1616 = vst [vmem:[%s379 + $0x50] sm:$0xff] %v1600
        %1617 = vst [vmem:[%s379 + $0x58] sm:$0xff] %v1601
        %1618 = vst [vmem:[%s379 + $0x60] sm:$0xff] %v1602
        %1619 = vst [vmem:[%s379 + $0x68] sm:$0xff] %v1603
        %1620 = vst [vmem:[%s379 + $0x70] sm:$0xff] %v1604
        %1621 = vst [vmem:[%s379 + $0x78] sm:$0xff] %v1605
        %1622 = vst [vmem:[%s386] sm:$0xff] %v1277
        %1623 = vst [vmem:[%s386 + $0x8] sm:$0xff] %v1278
        %1624 = vst [vmem:[%s386 + $0x10] sm:$0xff] %v1279
        %1625 = vst [vmem:[%s386 + $0x18] sm:$0xff] %v1280
        %1626 = vst [vmem:[%s386 + $0x20] sm:$0xff] %v1281
        %1627 = vst [vmem:[%s386 + $0x28] sm:$0xff] %v1282
        %1628 = vst [vmem:[%s386 + $0x30] sm:$0xff] %v1283
        %1629 = vst [vmem:[%s386 + $0x38] sm:$0xff] %v1284
        %s1630 = sand.u32 %s199, 1
        %s1631 = scalar_lea.sflag [#allocation8], %s1630
        %s1632 = sand.u32 %s199, 1
        %s1633 = smul.addr %s1632, 128
        %s1634 = scalar_lea.vmem [#allocation14], %s1633
        %s1635 = sand.u32 %s225, 1
        %s1636 = scalar_lea.sflag [#allocation16], %s1635
        %s1637 = sand.u32 %s225, 1
        %s1638 = smul.addr %s1637, 64
        %s1639 = scalar_lea.vmem [#allocation15], %s1638
        // Predicated region
        $region109: #{decoder_step_pallas.1} parent=47 // pred_check
          %p1640 = pneg %p209
        $region110: #{decoder_step_pallas.1} parent=47 // pred_check_branch
          %1642 = sbr.rel (%p1640) target = $region112
        $region111: #{decoder_step_pallas.1} parent=47 // pred_region
          %s1643 = smul.u32 8, %s39
          %s1645 = ssub.s32 2048, 2048
          %1646 = vsyncadd %s1631, %s1645
          %s1647 = smul.addr %s1643, 2
          %s1648 = smul.addr %s1647, 128
          %s1649 = scalar_lea.hbm %s9, %s1648
          %s1650 = sshll.u32 %s1634, 4
          %s1651 = int_to_ptr.vmem [resolvable:$true] %s1650
          %1656 = dma.vmem_to_hbm [thread:$0]  %s1651, 2048, %s1649, %s1631, 256, 256, 16
        $region112: #{decoder_step_pallas.1} parent=47 // pred_fallthru
          _
        // Predicated region
        $region113: #{decoder_step_pallas.1} parent=47 // pred_check
          %p1657 = pneg %p235
        $region114: #{decoder_step_pallas.1} parent=47 // pred_check_branch
          %1659 = sbr.rel (%p1657) target = $region116
        $region115: #{decoder_step_pallas.1} parent=47 // pred_region
          %s1660 = smul.u32 8, %s39
          %s1662 = ssub.s32 1024, 1024
          %1663 = vsyncadd %s1636, %s1662
          %s1664 = smul.addr %s1660, 128
          %s1665 = scalar_lea.hbm %s10, %s1664
          %s1666 = sshll.u32 %s1639, 4
          %s1667 = int_to_ptr.vmem [resolvable:$true] %s1666
          %1672 = dma.vmem_to_hbm [thread:$0]  %s1667, 1024, %s1665, %s1636, 128, 128, 8
        $region116: #{decoder_step_pallas.1} parent=47 // pred_fallthru
          _
      $region48: #{decoder_step_pallas.1} parent=5 // pred_fallthru
        _
      %p1673 = scmp.le.s32.totalorder 2, %s34
      // Predicated region
      $region117: #{decoder_step_pallas.1} parent=5 // pred_check
        %p1674 = pneg %p1673
      $region118: #{decoder_step_pallas.1} parent=5 // pred_check_branch
        %1676 = sbr.rel (%p1674) target = $region120
      $region119: #{decoder_step_pallas.1} parent=5 // pred_region
        %s1677 = ssub.s32 %s34, 2
        // Predicated region
        $region121: #{decoder_step_pallas.1} parent=119 // pred_check
          %p1678 = pneg %p215
        $region122: #{decoder_step_pallas.1} parent=119 // pred_check_branch
          %1680 = sbr.rel (%p1678) target = $region124
        $region123: #{decoder_step_pallas.1} parent=119 // pred_region
          %s1681 = sand.u32 %s200, 1
          %s1682 = scalar_lea.sflag [#allocation8], %s1681
          %s1683 = sand.u32 %s200, 1
          %s1684 = smul.addr %s1683, 128
          %s1685 = scalar_lea.vmem [#allocation14], %s1684
          %1686 = dma.done %s1682, 2048
        $region124: #{decoder_step_pallas.1} parent=119 // pred_fallthru
          _
        // Predicated region
        $region125: #{decoder_step_pallas.1} parent=119 // pred_check
          %p1687 = pneg %p241
        $region126: #{decoder_step_pallas.1} parent=119 // pred_check_branch
          %1689 = sbr.rel (%p1687) target = $region128
        $region127: #{decoder_step_pallas.1} parent=119 // pred_region
          %s1690 = sand.u32 %s226, 1
          %s1691 = scalar_lea.sflag [#allocation16], %s1690
          %s1692 = sand.u32 %s226, 1
          %s1693 = smul.addr %s1692, 64
          %s1694 = scalar_lea.vmem [#allocation15], %s1693
          %1695 = dma.done %s1691, 1024
        $region128: #{decoder_step_pallas.1} parent=119 // pred_fallthru
          _
      $region120: #{decoder_step_pallas.1} parent=5 // pred_fallthru
        _
    $region6: #{decoder_step_pallas.1} parent=1 // loop_footer
      %s38 = sadd.s32 1, %s34
    $region7: #{decoder_step_pallas.1} parent=1 // loop_footer_branch
      %33 = sbr.rel target = $region3
    $region8: #{decoder_step_pallas.1} parent=1 // loop_exit
      _
    %1696 = vsyncpa [#allocation7], 1
    %s1697 = scalar_lea.sflag [#allocation7], 1
    %1698 = vsyncpa %s1697, 1
    %1699 = vsyncpa [#allocation10], 1
    %1700 = vsyncpa [#allocation13], 1
    %1701 = vsyncpa [#allocation8], 1
    %s1702 = scalar_lea.sflag [#allocation8], 1
    %1703 = vsyncpa %s1702, 1
    %1704 = vsyncpa [#allocation16], 1
    %s1705 = scalar_lea.sflag [#allocation16], 1
    %1706 = vsyncpa %s1705, 1
  %1707 = vsyncmov [#allocation3]
  %s1708 = vpop.sfrf %1707
  %p1709 = scmp.eq.s32.totalorder %s1708, 0
  %p1710 = pneg %p1709
  %1712 = shalt.err (%p1710)

</llo_original>
